<compile_context>
chip_gen: v7x
topology: tpu7x:2x2x1
jax: 0.10.0
libtpu: 0.0.40
codegen_flags: <defaults>
</compile_context>

<pallas_src>
import functools
import math

import jax
import jax.numpy as jnp
from jax.experimental import pallas as pl
from jax.experimental.pallas import tpu as pltpu


# ----------------------------- Pallas kernels -----------------------------

def _mm_bias_act_T_kernel(w_ref, p_ref, b_ref, o_ref, *, act):
    # out = act(W @ P + b), W:(R,K) bf16, P:(K,L) f32->bf16, b:(R,1) f32
    acc = jnp.dot(w_ref[...], p_ref[...].astype(jnp.bfloat16),
                  preferred_element_type=jnp.float32)
    acc = acc + b_ref[...]
    if act == "relu":
        acc = jnp.maximum(acc, 0.0)
    elif act == "sigmoid":
        acc = jax.nn.sigmoid(acc)
    o_ref[...] = acc.astype(o_ref.dtype)


def matmul_bias_act_T(w, p, b, act="none"):
    """out = act(w @ p + b), lane-dense output (R, L) with L = B*Ho*Wo."""
    R, K = w.shape
    K2, L = p.shape
    assert K == K2
    flops = 2 * R * K * L
    trans = R * L if act == "sigmoid" else 0
    bytes_accessed = int(w.size) * 2 + int(p.size) * 4 + int(b.size) * 4 + R * L * 4
    return pl.pallas_call(
        functools.partial(_mm_bias_act_T_kernel, act=act),
        out_shape=jax.ShapeDtypeStruct((R, L), jnp.float32),
        grid=(1,),
        in_specs=[
            pl.BlockSpec((R, K), lambda i: (0, 0)),
            pl.BlockSpec((K, L), lambda i: (0, 0)),
            pl.BlockSpec((R, 1), lambda i: (0, 0)),
        ],
        out_specs=pl.BlockSpec((R, L), lambda i: (0, 0)),
        compiler_params=pltpu.CompilerParams(
            dimension_semantics=("arbitrary",)),
        cost_estimate=pl.CostEstimate(
            flops=flops, transcendentals=trans, bytes_accessed=bytes_accessed),
    )(w, p, b)


def _fused_dense_kernel(h_ref, eps_ref,
                        pw1_ref, pb1_ref, pw2_ref, pb2_ref,
                        msw1_ref, msb1_ref, msw2_ref, msb2_ref,
                        dw1_ref, db1_ref, dw2_ref, db2_ref,
                        z_ref, mu_ref, sig_ref, *, latent):
    """pre_encoder -> merged(mu|sig) -> reparam -> pre_encoder -> decoder_NN.

    Everything stays VMEM-resident; all matmuls are bf16 x bf16 -> f32.
    """
    def lin(x, w_ref, b_ref, relu):
        y = jnp.dot(x.astype(jnp.bfloat16), w_ref[...],
                    preferred_element_type=jnp.float32) + b_ref[...]
        return jnp.maximum(y, 0.0) if relu else y

    # encode: pre_encoder
    h = h_ref[...]
    h = lin(h, pw1_ref, pb1_ref, True)
    h = lin(h, pw2_ref, pb2_ref, False)

    # merged mu/sigma MLP (concat layer-1, block-diag layer-2)
    t = lin(h, msw1_ref, msb1_ref, True)        # (B, 2*hidden)
    ms = lin(t, msw2_ref, msb2_ref, False)      # (B, 2*latent)
    mu = ms[:, :latent]
    sig = ms[:, latent:]
    mu_ref[...] = mu
    sig_ref[...] = sig

    # reparametrization: z = mu + exp(0.5*logvar) * eps
    z = mu + jnp.exp(0.5 * sig) * eps_ref[...]

    # literal PyTorch forward order: z -> pre_encoder -> decoder_NN
    z = lin(z, pw1_ref, pb1_ref, True)
    z = lin(z, pw2_ref, pb2_ref, False)
    z = lin(z, dw1_ref, db1_ref, True)
    z = lin(z, dw2_ref, db2_ref, False)
    z_ref[...] = z


def fused_dense(h, eps, d):
    B = h.shape[0]
    latent = d["msw2"].shape[1] // 2
    z_dim = d["dw2"].shape[1]

    args = [h, eps,
            d["pw1"], d["pb1"], d["pw2"], d["pb2"],
            d["msw1"], d["msb1"], d["msw2"], d["msb2"],
            d["dw1"], d["db1"], d["dw2"], d["db2"]]
    weights = [d["pw1"], d["pw2"], d["msw1"], d["msw2"],
               d["pw1"], d["pw2"], d["dw1"], d["dw2"]]
    flops = sum(2 * B * w.shape[0] * w.shape[1] for w in weights)
    bytes_accessed = sum(int(a.size) * a.dtype.itemsize for a in args)
    bytes_accessed += 4 * B * (z_dim + 2 * latent)

    in_specs = [pl.BlockSpec(a.shape, lambda i: (0, 0)) for a in args]
    out_shape = (jax.ShapeDtypeStruct((B, z_dim), jnp.float32),
                 jax.ShapeDtypeStruct((B, latent), jnp.float32),
                 jax.ShapeDtypeStruct((B, latent), jnp.float32))
    out_specs = (pl.BlockSpec((B, z_dim), lambda i: (0, 0)),
                 pl.BlockSpec((B, latent), lambda i: (0, 0)),
                 pl.BlockSpec((B, latent), lambda i: (0, 0)))

    return pl.pallas_call(
        functools.partial(_fused_dense_kernel, latent=latent),
        out_shape=out_shape,
        grid=(1,),
        in_specs=in_specs,
        out_specs=out_specs,
        compiler_params=pltpu.CompilerParams(
            dimension_semantics=("arbitrary",)),
        cost_estimate=pl.CostEstimate(
            flops=flops, transcendentals=B * latent,
            bytes_accessed=bytes_accessed),
    )(*args)


# --------------------------- conv glue (CBHW) ---------------------------

def conv_output_shape(idim, kernel_size=3, stride=2, pad=1, dilation=1):
    return (idim + 2 * pad - dilation * (kernel_size - 1) - 1) // stride + 1


def _im2col_T(x, KH, KW, stride, pad):
    # x: (C, B, H, W)  ->  patches_T (C*KH*KW, B*Ho*Wo)
    C, B, H, W = x.shape
    Ho = (H + 2 * pad - KH) // stride + 1
    Wo = (W + 2 * pad - KW) // stride + 1
    xp = jnp.pad(x, ((0, 0), (0, 0), (pad, pad), (pad, pad)))
    taps = []
    for kh in range(KH):
        for kw in range(KW):
            taps.append(
                xp[:, :,
                   kh:kh + stride * (Ho - 1) + 1:stride,
                   kw:kw + stride * (Wo - 1) + 1:stride])
    pt = jnp.stack(taps, axis=1)                      # (C, KH*KW, B, Ho, Wo)
    pt = pt.reshape(C * KH * KW, B * Ho * Wo)
    return pt, Ho, Wo


def conv2d_cbhw(x, w_mat, b_col, stride, pad, act, k=3):
    # w_mat: (Cout, Cin*k*k) bf16, b_col: (Cout, 1) f32, x: (C, B, H, W)
    C, B, H, W = x.shape
    Cout = w_mat.shape[0]
    pt, Ho, Wo = _im2col_T(x, k, k, stride, pad)
    out = matmul_bias_act_T(w_mat, pt, b_col, act)    # (Cout, B*Ho*Wo)
    return out.reshape(Cout, B, Ho, Wo)


def deconv2d_cbhw(x, wd_mat, b_col, act):
    # Subpixel (polyphase) decomposition of ConvTranspose2d(k=3, s=2, p=1,
    # output_padding=1): 4 output parity classes computed in one matmul
    # whose K axis is only Cin*4 (no zero-dilated input).
    C, B, H, W = x.shape
    Cout = wd_mat.shape[0] // 4
    xp = jnp.pad(x, ((0, 0), (0, 0), (0, 1), (0, 1)))
    taps = [xp[:, :, dh:dh + H, dw:dw + W] for dh in (0, 1) for dw in (0, 1)]
    pt = jnp.stack(taps, axis=1).reshape(C * 4, B * H * W)
    out = matmul_bias_act_T(wd_mat, pt, b_col, act)   # (4*Cout, B*H*W)
    out = out.reshape(2, 2, Cout, B, H, W)
    out = out.transpose(2, 3, 4, 0, 5, 1).reshape(Cout, B, 2 * H, 2 * W)
    return out


# ------------------------------ parameters ------------------------------

def _init_linear(key, in_dim, out_dim):
    k1, k2 = jax.random.split(key)
    lim = 1.0 / math.sqrt(in_dim)
    w = jax.random.uniform(k1, (in_dim, out_dim), jnp.float32, -lim, lim)
    b = jax.random.uniform(k2, (out_dim,), jnp.float32, -lim, lim)
    return w, b


def _init_conv(key, cout, cin, k):
    k1, k2 = jax.random.split(key)
    lim = 1.0 / math.sqrt(cin * k * k)
    w = jax.random.uniform(k1, (cout, cin, k, k), jnp.float32, -lim, lim)
    b = jax.random.uniform(k2, (cout,), jnp.float32, -lim, lim)
    return w, b


def _init_convT(key, cin, cout, k):
    k1, k2 = jax.random.split(key)
    lim = 1.0 / math.sqrt(cin * k * k)
    w = jax.random.uniform(k1, (cin, cout, k, k), jnp.float32, -lim, lim)
    b = jax.random.uniform(k2, (cout,), jnp.float32, -lim, lim)
    return w, b


def _init_mlp(key, in_dim, out_dim, layer_sizes):
    dims = [in_dim] + list(layer_sizes) + [out_dim]
    keys = jax.random.split(key, len(dims) - 1)
    return [_init_linear(k, dims[i], dims[i + 1]) for i, k in enumerate(keys)]


def init_params(key, image_channels, repr_sizes, NN_input, pre_layer_sizes,
                layer_sizes, pre_output, latent_space_size):
    keys = jax.random.split(key, 8)
    enc_ch = [image_channels] + list(repr_sizes)
    dec_ch = list(repr_sizes[::-1]) + [image_channels]
    kconv = jax.random.split(keys[0], len(repr_sizes))
    kdec = jax.random.split(keys[1], len(repr_sizes))
    return {
        "enc_conv": [_init_conv(kconv[i], enc_ch[i + 1], enc_ch[i], 3)
                     for i in range(len(repr_sizes))],
        "pre_encoder": _init_mlp(keys[2], NN_input, pre_output, pre_layer_sizes),
        "enc_mu": _init_mlp(keys[3], pre_output, latent_space_size, layer_sizes),
        "enc_sig": _init_mlp(keys[4], pre_output, latent_space_size, layer_sizes),
        "decoder_NN": _init_mlp(keys[5], latent_space_size, pre_output,
                                layer_sizes[::-1]),
        "dec_conv": [_init_convT(kdec[i], dec_ch[i], dec_ch[i + 1], 3)
                     for i in range(len(repr_sizes))],
    }


def pack_params(params):
    """Pre-pack PyTorch-layout parameters into kernel-ready matrices (bf16)."""
    packed = {}

    # encoder convs: (Cout, Cin, 3, 3) -> (Cout, Cin*9)
    enc = []
    for (w, b) in params["enc_conv"]:
        Cout, Cin, KH, KW = w.shape
        enc.append((w.reshape(Cout, Cin * KH * KW).astype(jnp.bfloat16),
                    b.reshape(Cout, 1).astype(jnp.float32)))
    packed["enc_conv"] = enc

    # dense stack (each NeuralNet is [in -> hidden -> out] for this config)
    (pw1, pb1), (pw2, pb2) = params["pre_encoder"]
    (mw1, mb1), (mw2, mb2) = params["enc_mu"]
    (sw1, sb1), (sw2, sb2) = params["enc_sig"]
    (dw1, db1), (dw2, db2) = params["decoder_NN"]
    H1 = mw1.shape[1]                     # hidden width of mu/sig nets
    L = mw2.shape[1]                      # latent size
    msw1 = jnp.concatenate([mw1, sw1], axis=1)            # (pre_out, 2*H1)
    msb1 = jnp.concatenate([mb1, sb1], axis=0)            # (2*H1,)
    msw2 = jnp.zeros((2 * H1, 2 * L), jnp.float32)
    msw2 = msw2.at[:H1, :L].set(mw2).at[H1:, L:].set(sw2)  # block-diagonal
    msb2 = jnp.concatenate([mb2, sb2], axis=0)             # (2*L,)
    packed["dense"] = dict(
        pw1=pw1.astype(jnp.bfloat16), pb1=pb1.reshape(1, -1),
        pw2=pw2.astype(jnp.bfloat16), pb2=pb2.reshape(1, -1),
        msw1=msw1.astype(jnp.bfloat16), msb1=msb1.reshape(1, -1),
        msw2=msw2.astype(jnp.bfloat16), msb2=msb2.reshape(1, -1),
        dw1=dw1.astype(jnp.bfloat16), db1=db1.reshape(1, -1),
        dw2=dw2.astype(jnp.bfloat16), db2=db2.reshape(1, -1))

    # decoder transposed convs -> polyphase sub-kernel matrix (4*Cout, Cin*4)
    # ConvTranspose2d(k=3, s=2, p=1): oh = 2*ih + kh - 1, so
    #   even output rows use kh=1 (tap dh=0); odd rows use kh=2 (dh=0), kh=0 (dh=1).
    kmap = {(0, 0): 1, (1, 0): 2, (1, 1): 0}
    dec = []
    for (w, b) in params["dec_conv"]:          # w: (Cin, Cout, 3, 3)
        Cin, Cout = w.shape[0], w.shape[1]
        wfull = jnp.zeros((2, 2, Cout, Cin, 2, 2), jnp.float32)
        for po in (0, 1):
            for pw_ in (0, 1):
                for dh in (0, 1):
                    for dw in (0, 1):
                        kh = kmap.get((po, dh))
                        kw = kmap.get((pw_, dw))
                        if kh is None or kw is None:
                            continue
                        wfull = wfull.at[po, pw_, :, :, dh, dw].set(w[:, :, kh, kw].T)
        wd = wfull.reshape(4 * Cout, Cin * 4).astype(jnp.bfloat16)
        bd = jnp.tile(b, 4).reshape(4 * Cout, 1).astype(jnp.float32)
        dec.append((wd, bd))
    packed["dec_conv"] = dec
    return packed


# ------------------------------- forward -------------------------------

def b_encodeco_forward(packed, x, eps, conv_shape):
    B = x.shape[0]

    # NCHW -> CBHW once; activations stay CBHW through the conv stack.
    h = x.transpose(1, 0, 2, 3)
    for (wm, bcol) in packed["enc_conv"]:
        h = conv2d_cbhw(h, wm, bcol, stride=2, pad=1, act="relu")

    # flatten (s_view) in PyTorch order: (B, C*H*W)
    C, _, Ho, Wo = h.shape
    h0 = h.transpose(1, 0, 2, 3).reshape(B, C * Ho * Wo)

    # fused dense stack: pre_encoder -> mu/sig -> reparam -> pre_encoder -> decoder_NN
    z, mu, sig = fused_dense(h0, eps, packed["dense"])

    # un-flatten back to conv shape, NCHW -> CBHW
    zc = z.reshape(B, *conv_shape).transpose(1, 0, 2, 3)

    # decoder transposed convs; final Sigmoid (lact) fused into the last matmul.
    n_dec = len(packed["dec_conv"])
    for i, (wd, bcol) in enumerate(packed["dec_conv"]):
        act = "relu" if i < n_dec - 1 else "sigmoid"
        zc = deconv2d_cbhw(zc, wd, bcol, act=act)

    out = zc.transpose(1, 0, 2, 3)   # CBHW -> NCHW
    return out, mu, sig


# --------------------------------- main ---------------------------------

if __name__ == "__main__":
    # Small, self-consistent config (NN_input == pre_output == latent_space_size)
    image_dim = 16
    image_channels = 3
    repr_sizes = [4, 8]
    pre_layer_sizes = [64]
    layer_sizes = [64]

    odim = image_dim
    for _ in repr_sizes:
        odim = conv_output_shape(odim, kernel_size=3, stride=2, pad=1, dilation=1)
    NN_input = odim * odim * repr_sizes[-1]          # 4*4*8 = 128
    pre_output = NN_input                            # 128
    latent_space_size = NN_input                     # 128
    conv_shape = (repr_sizes[-1], odim, odim)        # (8, 4, 4)

    key = jax.random.PRNGKey(0)
    kp, kx, ke = jax.random.split(key, 3)
    raw_params = init_params(kp, image_channels, repr_sizes, NN_input,
                             pre_layer_sizes, layer_sizes, pre_output,
                             latent_space_size)
    packed = pack_params(raw_params)

    B = 2
    x = jax.random.normal(kx, (B, image_channels, image_dim, image_dim),
                          jnp.float32)
    eps = jax.random.normal(ke, (B, latent_space_size), jnp.float32)

    fwd = jax.jit(functools.partial(b_encodeco_forward, conv_shape=conv_shape))
    z, mu, sig = fwd(packed, x, eps)
    jax.block_until_ready((z, mu, sig))

    assert z.shape == (B, image_channels, image_dim, image_dim)
    assert mu.shape == (B, latent_space_size)
    assert sig.shape == (B, latent_space_size)
    assert bool(jnp.all(jnp.isfinite(z)) & jnp.all(z >= 0.0) & jnp.all(z <= 1.0))
    print("KERNEL_OK")
</pallas_src>

<mosaic_0001>
module attributes {stable_mosaic.version = 11 : i64} {
  func.func @_mm_bias_act_T_kernel(%arg0: i32, %arg1: memref<4x27xbf16, #tpu.memory_space<vmem>>, %arg2: memref<27x128xf32, #tpu.memory_space<vmem>>, %arg3: memref<4x1xf32, #tpu.memory_space<vmem>>, %arg4: memref<4x128xf32, #tpu.memory_space<vmem>>) attributes {dimension_semantics = [#tpu.dimension_semantics<arbitrary>], iteration_bounds = array<i64: 1>, scalar_prefetch = 0 : i64, scratch_operands = 0 : i64, tpu.core_type = #tpu.core_type<tc>, window_params = [{pipeline_mode = #tpu.pipeline_mode<synchronous>, transform_indices = @transform_0, window_bounds = array<i64: 4, 27>}, {pipeline_mode = #tpu.pipeline_mode<synchronous>, transform_indices = @transform_1, window_bounds = array<i64: 27, 128>}, {pipeline_mode = #tpu.pipeline_mode<synchronous>, transform_indices = @transform_2, window_bounds = array<i64: 4, 1>}, {pipeline_mode = #tpu.pipeline_mode<synchronous>, transform_indices = @transform_3, window_bounds = array<i64: 4, 128>}]} {
    %c0 = arith.constant 0 : index
    %c0_0 = arith.constant 0 : index
    %0 = vector.load %arg1[%c0, %c0_0] : memref<4x27xbf16, #tpu.memory_space<vmem>>, vector<4x27xbf16>
    %c0_1 = arith.constant 0 : index
    %c0_2 = arith.constant 0 : index
    %1 = vector.load %arg2[%c0_1, %c0_2] : memref<27x128xf32, #tpu.memory_space<vmem>>, vector<27x128xf32>
    %2 = arith.truncf %1 : vector<27x128xf32> to vector<27x128xbf16>
    %cst = arith.constant dense<0.000000e+00> : vector<4x128xf32>
    %3 = tpu.matmul %0, %2, %cst {dimension_numbers = #tpu.dot_dimension_numbers<[1], [0], [0], [1], [0, 0, 1, 1], [], []>} : vector<4x27xbf16>, vector<27x128xbf16>, vector<4x128xf32> -> vector<4x128xf32>
    %c0_3 = arith.constant 0 : index
    %c0_4 = arith.constant 0 : index
    %4 = vector.load %arg3[%c0_3, %c0_4] : memref<4x1xf32, #tpu.memory_space<vmem>>, vector<4x1xf32>
    %5 = vector.broadcast %4 : vector<4x1xf32> to vector<4x128xf32>
    %6 = arith.addf %3, %5 : vector<4x128xf32>
    %cst_5 = arith.constant 0.000000e+00 : f32
    %7 = vector.broadcast %cst_5 : f32 to vector<4x128xf32>
    %8 = arith.maximumf %6, %7 : vector<4x128xf32>
    %c0_6 = arith.constant 0 : index
    %c0_7 = arith.constant 0 : index
    %9 = vector.load %arg4[%c0_6, %c0_7] : memref<4x128xf32, #tpu.memory_space<vmem>>, vector<4x128xf32>
    tpu.vector_store %arg4[%c0_6, %c0_7], %8 {strides = array<i32>} : memref<4x128xf32, #tpu.memory_space<vmem>>, vector<4x128xf32>,
    return
  }
  func.func @transform_0(%arg0: i32) -> (i32, i32) {
    %c0_i32 = arith.constant 0 : i32
    %c0_i32_0 = arith.constant 0 : i32
    %c0_i32_1 = arith.constant 0 : i32
    return %c0_i32, %c0_i32_0 : i32, i32
  }
  func.func @transform_1(%arg0: i32) -> (i32, i32) {
    %c0_i32 = arith.constant 0 : i32
    %c0_i32_0 = arith.constant 0 : i32
    %c0_i32_1 = arith.constant 0 : i32
    return %c0_i32, %c0_i32_0 : i32, i32
  }
  func.func @transform_2(%arg0: i32) -> (i32, i32) {
    %c0_i32 = arith.constant 0 : i32
    %c0_i32_0 = arith.constant 0 : i32
    %c0_i32_1 = arith.constant 0 : i32
    return %c0_i32, %c0_i32_0 : i32, i32
  }
  func.func @transform_3(%arg0: i32) -> (i32, i32) {
    %c0_i32 = arith.constant 0 : i32
    %c0_i32_0 = arith.constant 0 : i32
    %c0_i32_1 = arith.constant 0 : i32
    return %c0_i32, %c0_i32_0 : i32, i32
  }
}

module attributes {stable_mosaic.version = 11 : i64} {
  func.func @_mm_bias_act_T_kernel(%arg0: i32, %arg1: memref<8x36xbf16, #tpu.memory_space<vmem>>, %arg2: memref<36x32xf32, #tpu.memory_space<vmem>>, %arg3: memref<8x1xf32, #tpu.memory_space<vmem>>, %arg4: memref<8x32xf32, #tpu.memory_space<vmem>>) attributes {dimension_semantics = [#tpu.dimension_semantics<arbitrary>], iteration_bounds = array<i64: 1>, scalar_prefetch = 0 : i64, scratch_operands = 0 : i64, tpu.core_type = #tpu.core_type<tc>, window_params = [{pipeline_mode = #tpu.pipeline_mode<synchronous>, transform_indices = @transform_0, window_bounds = array<i64: 8, 36>}, {pipeline_mode = #tpu.pipeline_mode<synchronous>, transform_indices = @transform_1, window_bounds = array<i64: 36, 32>}, {pipeline_mode = #tpu.pipeline_mode<synchronous>, transform_indices = @transform_2, window_bounds = array<i64: 8, 1>}, {pipeline_mode = #tpu.pipeline_mode<synchronous>, transform_indices = @transform_3, window_bounds = array<i64: 8, 32>}]} {
    %c0 = arith.constant 0 : index
    %c0_0 = arith.constant 0 : index
    %0 = vector.load %arg1[%c0, %c0_0] : memref<8x36xbf16, #tpu.memory_space<vmem>>, vector<8x36xbf16>
    %c0_1 = arith.constant 0 : index
    %c0_2 = arith.constant 0 : index
    %1 = vector.load %arg2[%c0_1, %c0_2] : memref<36x32xf32, #tpu.memory_space<vmem>>, vector<36x32xf32>
    %2 = arith.truncf %1 : vector<36x32xf32> to vector<36x32xbf16>
    %cst = arith.constant dense<0.000000e+00> : vector<8x32xf32>
    %3 = tpu.matmul %0, %2, %cst {dimension_numbers = #tpu.dot_dimension_numbers<[1], [0], [0], [1], [0, 0, 1, 1], [], []>} : vector<8x36xbf16>, vector<36x32xbf16>, vector<8x32xf32> -> vector<8x32xf32>
    %c0_3 = arith.constant 0 : index
    %c0_4 = arith.constant 0 : index
    %4 = vector.load %arg3[%c0_3, %c0_4] : memref<8x1xf32, #tpu.memory_space<vmem>>, vector<8x1xf32>
    %5 = vector.broadcast %4 : vector<8x1xf32> to vector<8x32xf32>
    %6 = arith.addf %3, %5 : vector<8x32xf32>
    %cst_5 = arith.constant 0.000000e+00 : f32
    %7 = vector.broadcast %cst_5 : f32 to vector<8x32xf32>
    %8 = arith.maximumf %6, %7 : vector<8x32xf32>
    %c0_6 = arith.constant 0 : index
    %c0_7 = arith.constant 0 : index
    %9 = vector.load %arg4[%c0_6, %c0_7] : memref<8x32xf32, #tpu.memory_space<vmem>>, vector<8x32xf32>
    tpu.vector_store %arg4[%c0_6, %c0_7], %8 {strides = array<i32>} : memref<8x32xf32, #tpu.memory_space<vmem>>, vector<8x32xf32>,
    return
  }
  func.func @transform_0(%arg0: i32) -> (i32, i32) {
    %c0_i32 = arith.constant 0 : i32
    %c0_i32_0 = arith.constant 0 : i32
    %c0_i32_1 = arith.constant 0 : i32
    return %c0_i32, %c0_i32_0 : i32, i32
  }
  func.func @transform_1(%arg0: i32) -> (i32, i32) {
    %c0_i32 = arith.constant 0 : i32
    %c0_i32_0 = arith.constant 0 : i32
    %c0_i32_1 = arith.constant 0 : i32
    return %c0_i32, %c0_i32_0 : i32, i32
  }
  func.func @transform_2(%arg0: i32) -> (i32, i32) {
    %c0_i32 = arith.constant 0 : i32
    %c0_i32_0 = arith.constant 0 : i32
    %c0_i32_1 = arith.constant 0 : i32
    return %c0_i32, %c0_i32_0 : i32, i32
  }
  func.func @transform_3(%arg0: i32) -> (i32, i32) {
    %c0_i32 = arith.constant 0 : i32
    %c0_i32_0 = arith.constant 0 : i32
    %c0_i32_1 = arith.constant 0 : i32
    return %c0_i32, %c0_i32_0 : i32, i32
  }
}

module attributes {stable_mosaic.version = 11 : i64} {
  func.func @_fused_dense_kernel(%arg0: i32, %arg1: memref<2x128xf32, #tpu.memory_space<vmem>>, %arg2: memref<2x128xf32, #tpu.memory_space<vmem>>, %arg3: memref<128x64xbf16, #tpu.memory_space<vmem>>, %arg4: memref<1x64xf32, #tpu.memory_space<vmem>>, %arg5: memref<64x128xbf16, #tpu.memory_space<vmem>>, %arg6: memref<1x128xf32, #tpu.memory_space<vmem>>, %arg7: memref<128x128xbf16, #tpu.memory_space<vmem>>, %arg8: memref<1x128xf32, #tpu.memory_space<vmem>>, %arg9: memref<128x256xbf16, #tpu.memory_space<vmem>>, %arg10: memref<1x256xf32, #tpu.memory_space<vmem>>, %arg11: memref<128x64xbf16, #tpu.memory_space<vmem>>, %arg12: memref<1x64xf32, #tpu.memory_space<vmem>>, %arg13: memref<64x128xbf16, #tpu.memory_space<vmem>>, %arg14: memref<1x128xf32, #tpu.memory_space<vmem>>, %arg15: memref<2x128xf32, #tpu.memory_space<vmem>>, %arg16: memref<2x128xf32, #tpu.memory_space<vmem>>, %arg17: memref<2x128xf32, #tpu.memory_space<vmem>>) attributes {dimension_semantics = [#tpu.dimension_semantics<arbitrary>], iteration_bounds = array<i64: 1>, scalar_prefetch = 0 : i64, scratch_operands = 0 : i64, tpu.core_type = #tpu.core_type<tc>, window_params = [{pipeline_mode = #tpu.pipeline_mode<synchronous>, transform_indices = @transform_0, window_bounds = array<i64: 2, 128>}, {pipeline_mode = #tpu.pipeline_mode<synchronous>, transform_indices = @transform_1, window_bounds = array<i64: 2, 128>}, {pipeline_mode = #tpu.pipeline_mode<synchronous>, transform_indices = @transform_2, window_bounds = array<i64: 128, 64>}, {pipeline_mode = #tpu.pipeline_mode<synchronous>, transform_indices = @transform_3, window_bounds = array<i64: 1, 64>}, {pipeline_mode = #tpu.pipeline_mode<synchronous>, transform_indices = @transform_4, window_bounds = array<i64: 64, 128>}, {pipeline_mode = #tpu.pipeline_mode<synchronous>, transform_indices = @transform_5, window_bounds = array<i64: 1, 128>}, {pipeline_mode = #tpu.pipeline_mode<synchronous>, transform_indices = @transform_6, window_bounds = array<i64: 128, 128>}, {pipeline_mode = #tpu.pipeline_mode<synchronous>, transform_indices = @transform_7, window_bounds = array<i64: 1, 128>}, {pipeline_mode = #tpu.pipeline_mode<synchronous>, transform_indices = @transform_8, window_bounds = array<i64: 128, 256>}, {pipeline_mode = #tpu.pipeline_mode<synchronous>, transform_indices = @transform_9, window_bounds = array<i64: 1, 256>}, {pipeline_mode = #tpu.pipeline_mode<synchronous>, transform_indices = @transform_10, window_bounds = array<i64: 128, 64>}, {pipeline_mode = #tpu.pipeline_mode<synchronous>, transform_indices = @transform_11, window_bounds = array<i64: 1, 64>}, {pipeline_mode = #tpu.pipeline_mode<synchronous>, transform_indices = @transform_12, window_bounds = array<i64: 64, 128>}, {pipeline_mode = #tpu.pipeline_mode<synchronous>, transform_indices = @transform_13, window_bounds = array<i64: 1, 128>}, {pipeline_mode = #tpu.pipeline_mode<synchronous>, transform_indices = @transform_14, window_bounds = array<i64: 2, 128>}, {pipeline_mode = #tpu.pipeline_mode<synchronous>, transform_indices = @transform_15, window_bounds = array<i64: 2, 128>}, {pipeline_mode = #tpu.pipeline_mode<synchronous>, transform_indices = @transform_16, window_bounds = array<i64: 2, 128>}]} {
    %c0 = arith.constant 0 : index
    %c0_0 = arith.constant 0 : index
    %0 = vector.load %arg1[%c0, %c0_0] : memref<2x128xf32, #tpu.memory_space<vmem>>, vector<2x128xf32>
    %1 = arith.truncf %0 : vector<2x128xf32> to vector<2x128xbf16>
    %c0_1 = arith.constant 0 : index
    %c0_2 = arith.constant 0 : index
    %2 = vector.load %arg3[%c0_1, %c0_2] : memref<128x64xbf16, #tpu.memory_space<vmem>>, vector<128x64xbf16>
    %cst = arith.constant dense<0.000000e+00> : vector<2x64xf32>
    %3 = tpu.matmul %1, %2, %cst {dimension_numbers = #tpu.dot_dimension_numbers<[1], [0], [0], [1], [0, 0, 1, 1], [], []>} : vector<2x128xbf16>, vector<128x64xbf16>, vector<2x64xf32> -> vector<2x64xf32>
    %c0_3 = arith.constant 0 : index
    %c0_4 = arith.constant 0 : index
    %4 = vector.load %arg4[%c0_3, %c0_4] : memref<1x64xf32, #tpu.memory_space<vmem>>, vector<1x64xf32>
    %5 = vector.broadcast %4 : vector<1x64xf32> to vector<2x64xf32>
    %6 = arith.addf %3, %5 : vector<2x64xf32>
    %cst_5 = arith.constant 0.000000e+00 : f32
    %7 = vector.broadcast %cst_5 : f32 to vector<2x64xf32>
    %8 = arith.maximumf %6, %7 : vector<2x64xf32>
    %9 = arith.truncf %8 : vector<2x64xf32> to vector<2x64xbf16>
    %c0_6 = arith.constant 0 : index
    %c0_7 = arith.constant 0 : index
    %10 = vector.load %arg5[%c0_6, %c0_7] : memref<64x128xbf16, #tpu.memory_space<vmem>>, vector<64x128xbf16>
    %cst_8 = arith.constant dense<0.000000e+00> : vector<2x128xf32>
    %11 = tpu.matmul %9, %10, %cst_8 {dimension_numbers = #tpu.dot_dimension_numbers<[1], [0], [0], [1], [0, 0, 1, 1], [], []>} : vector<2x64xbf16>, vector<64x128xbf16>, vector<2x128xf32> -> vector<2x128xf32>
    %c0_9 = arith.constant 0 : index
    %c0_10 = arith.constant 0 : index
    %12 = vector.load %arg6[%c0_9, %c0_10] : memref<1x128xf32, #tpu.memory_space<vmem>>, vector<1x128xf32>
    %13 = vector.broadcast %12 : vector<1x128xf32> to vector<2x128xf32>
    %14 = arith.addf %11, %13 : vector<2x128xf32>
    %15 = arith.truncf %14 : vector<2x128xf32> to vector<2x128xbf16>
    %c0_11 = arith.constant 0 : index
    %c0_12 = arith.constant 0 : index
    %16 = vector.load %arg7[%c0_11, %c0_12] : memref<128x128xbf16, #tpu.memory_space<vmem>>, vector<128x128xbf16>
    %cst_13 = arith.constant dense<0.000000e+00> : vector<2x128xf32>
    %17 = tpu.matmul %15, %16, %cst_13 {dimension_numbers = #tpu.dot_dimension_numbers<[1], [0], [0], [1], [0, 0, 1, 1], [], []>} : vector<2x128xbf16>, vector<128x128xbf16>, vector<2x128xf32> -> vector<2x128xf32>
    %c0_14 = arith.constant 0 : index
    %c0_15 = arith.constant 0 : index
    %18 = vector.load %arg8[%c0_14, %c0_15] : memref<1x128xf32, #tpu.memory_space<vmem>>, vector<1x128xf32>
    %19 = vector.broadcast %18 : vector<1x128xf32> to vector<2x128xf32>
    %20 = arith.addf %17, %19 : vector<2x128xf32>
    %cst_16 = arith.constant 0.000000e+00 : f32
    %21 = vector.broadcast %cst_16 : f32 to vector<2x128xf32>
    %22 = arith.maximumf %20, %21 : vector<2x128xf32>
    %23 = arith.truncf %22 : vector<2x128xf32> to vector<2x128xbf16>
    %c0_17 = arith.constant 0 : index
    %c0_18 = arith.constant 0 : index
    %24 = vector.load %arg9[%c0_17, %c0_18] : memref<128x256xbf16, #tpu.memory_space<vmem>>, vector<128x256xbf16>
    %cst_19 = arith.constant dense<0.000000e+00> : vector<2x256xf32>
    %25 = tpu.matmul %23, %24, %cst_19 {dimension_numbers = #tpu.dot_dimension_numbers<[1], [0], [0], [1], [0, 0, 1, 1], [], []>} : vector<2x128xbf16>, vector<128x256xbf16>, vector<2x256xf32> -> vector<2x256xf32>
    %c0_20 = arith.constant 0 : index
    %c0_21 = arith.constant 0 : index
    %26 = vector.load %arg10[%c0_20, %c0_21] : memref<1x256xf32, #tpu.memory_space<vmem>>, vector<1x256xf32>
    %27 = vector.broadcast %26 : vector<1x256xf32> to vector<2x256xf32>
    %28 = arith.addf %25, %27 : vector<2x256xf32>
    %29 = vector.extract_strided_slice %28 {offsets = [0, 0], sizes = [2, 128], strides = [1, 1]} : vector<2x256xf32> to vector<2x128xf32>
    %30 = vector.extract_strided_slice %28 {offsets = [0, 128], sizes = [2, 128], strides = [1, 1]} : vector<2x256xf32> to vector<2x128xf32>
    %c0_22 = arith.constant 0 : index
    %c0_23 = arith.constant 0 : index
    %31 = vector.load %arg16[%c0_22, %c0_23] : memref<2x128xf32, #tpu.memory_space<vmem>>, vector<2x128xf32>
    tpu.vector_store %arg16[%c0_22, %c0_23], %29 {strides = array<i32>} : memref<2x128xf32, #tpu.memory_space<vmem>>, vector<2x128xf32>,
    %c0_24 = arith.constant 0 : index
    %c0_25 = arith.constant 0 : index
    %32 = vector.load %arg17[%c0_24, %c0_25] : memref<2x128xf32, #tpu.memory_space<vmem>>, vector<2x128xf32>
    tpu.vector_store %arg17[%c0_24, %c0_25], %30 {strides = array<i32>} : memref<2x128xf32, #tpu.memory_space<vmem>>, vector<2x128xf32>,
    %cst_26 = arith.constant 5.000000e-01 : f32
    %33 = vector.broadcast %cst_26 : f32 to vector<2x128xf32>
    %34 = arith.mulf %33, %30 : vector<2x128xf32>
    %35 = math.exp %34 : vector<2x128xf32>
    %c0_27 = arith.constant 0 : index
    %c0_28 = arith.constant 0 : index
    %36 = vector.load %arg2[%c0_27, %c0_28] : memref<2x128xf32, #tpu.memory_space<vmem>>, vector<2x128xf32>
    %37 = arith.mulf %35, %36 : vector<2x128xf32>
    %38 = arith.addf %29, %37 : vector<2x128xf32>
    %39 = arith.truncf %38 : vector<2x128xf32> to vector<2x128xbf16>
    %c0_29 = arith.constant 0 : index
    %c0_30 = arith.constant 0 : index
    %40 = vector.load %arg3[%c0_29, %c0_30] : memref<128x64xbf16, #tpu.memory_space<vmem>>, vector<128x64xbf16>
    %cst_31 = arith.constant dense<0.000000e+00> : vector<2x64xf32>
    %41 = tpu.matmul %39, %40, %cst_31 {dimension_numbers = #tpu.dot_dimension_numbers<[1], [0], [0], [1], [0, 0, 1, 1], [], []>} : vector<2x128xbf16>, vector<128x64xbf16>, vector<2x64xf32> -> vector<2x64xf32>
    %c0_32 = arith.constant 0 : index
    %c0_33 = arith.constant 0 : index
    %42 = vector.load %arg4[%c0_32, %c0_33] : memref<1x64xf32, #tpu.memory_space<vmem>>, vector<1x64xf32>
    %43 = vector.broadcast %42 : vector<1x64xf32> to vector<2x64xf32>
    %44 = arith.addf %41, %43 : vector<2x64xf32>
    %cst_34 = arith.constant 0.000000e+00 : f32
    %45 = vector.broadcast %cst_34 : f32 to vector<2x64xf32>
    %46 = arith.maximumf %44, %45 : vector<2x64xf32>
    %47 = arith.truncf %46 : vector<2x64xf32> to vector<2x64xbf16>
    %c0_35 = arith.constant 0 : index
    %c0_36 = arith.constant 0 : index
    %48 = vector.load %arg5[%c0_35, %c0_36] : memref<64x128xbf16, #tpu.memory_space<vmem>>, vector<64x128xbf16>
    %cst_37 = arith.constant dense<0.000000e+00> : vector<2x128xf32>
    %49 = tpu.matmul %47, %48, %cst_37 {dimension_numbers = #tpu.dot_dimension_numbers<[1], [0], [0], [1], [0, 0, 1, 1], [], []>} : vector<2x64xbf16>, vector<64x128xbf16>, vector<2x128xf32> -> vector<2x128xf32>
    %c0_38 = arith.constant 0 : index
    %c0_39 = arith.constant 0 : index
    %50 = vector.load %arg6[%c0_38, %c0_39] : memref<1x128xf32, #tpu.memory_space<vmem>>, vector<1x128xf32>
    %51 = vector.broadcast %50 : vector<1x128xf32> to vector<2x128xf32>
    %52 = arith.addf %49, %51 : vector<2x128xf32>
    %53 = arith.truncf %52 : vector<2x128xf32> to vector<2x128xbf16>
    %c0_40 = arith.constant 0 : index
    %c0_41 = arith.constant 0 : index
    %54 = vector.load %arg11[%c0_40, %c0_41] : memref<128x64xbf16, #tpu.memory_space<vmem>>, vector<128x64xbf16>
    %cst_42 = arith.constant dense<0.000000e+00> : vector<2x64xf32>
    %55 = tpu.matmul %53, %54, %cst_42 {dimension_numbers = #tpu.dot_dimension_numbers<[1], [0], [0], [1], [0, 0, 1, 1], [], []>} : vector<2x128xbf16>, vector<128x64xbf16>, vector<2x64xf32> -> vector<2x64xf32>
    %c0_43 = arith.constant 0 : index
    %c0_44 = arith.constant 0 : index
    %56 = vector.load %arg12[%c0_43, %c0_44] : memref<1x64xf32, #tpu.memory_space<vmem>>, vector<1x64xf32>
    %57 = vector.broadcast %56 : vector<1x64xf32> to vector<2x64xf32>
    %58 = arith.addf %55, %57 : vector<2x64xf32>
    %cst_45 = arith.constant 0.000000e+00 : f32
    %59 = vector.broadcast %cst_45 : f32 to vector<2x64xf32>
    %60 = arith.maximumf %58, %59 : vector<2x64xf32>
    %61 = arith.truncf %60 : vector<2x64xf32> to vector<2x64xbf16>
    %c0_46 = arith.constant 0 : index
    %c0_47 = arith.constant 0 : index
    %62 = vector.load %arg13[%c0_46, %c0_47] : memref<64x128xbf16, #tpu.memory_space<vmem>>, vector<64x128xbf16>
    %cst_48 = arith.constant dense<0.000000e+00> : vector<2x128xf32>
    %63 = tpu.matmul %61, %62, %cst_48 {dimension_numbers = #tpu.dot_dimension_numbers<[1], [0], [0], [1], [0, 0, 1, 1], [], []>} : vector<2x64xbf16>, vector<64x128xbf16>, vector<2x128xf32> -> vector<2x128xf32>
    %c0_49 = arith.constant 0 : index
    %c0_50 = arith.constant 0 : index
    %64 = vector.load %arg14[%c0_49, %c0_50] : memref<1x128xf32, #tpu.memory_space<vmem>>, vector<1x128xf32>
    %65 = vector.broadcast %64 : vector<1x128xf32> to vector<2x128xf32>
    %66 = arith.addf %63, %65 : vector<2x128xf32>
    %c0_51 = arith.constant 0 : index
    %c0_52 = arith.constant 0 : index
    %67 = vector.load %arg15[%c0_51, %c0_52] : memref<2x128xf32, #tpu.memory_space<vmem>>, vector<2x128xf32>
    tpu.vector_store %arg15[%c0_51, %c0_52], %66 {strides = array<i32>} : memref<2x128xf32, #tpu.memory_space<vmem>>, vector<2x128xf32>,
    return
  }
  func.func @transform_0(%arg0: i32) -> (i32, i32) {
    %c0_i32 = arith.constant 0 : i32
    %c0_i32_0 = arith.constant 0 : i32
    %c0_i32_1 = arith.constant 0 : i32
    return %c0_i32, %c0_i32_0 : i32, i32
  }
  func.func @transform_1(%arg0: i32) -> (i32, i32) {
    %c0_i32 = arith.constant 0 : i32
    %c0_i32_0 = arith.constant 0 : i32
    %c0_i32_1 = arith.constant 0 : i32
    return %c0_i32, %c0_i32_0 : i32, i32
  }
  func.func @transform_2(%arg0: i32) -> (i32, i32) {
    %c0_i32 = arith.constant 0 : i32
    %c0_i32_0 = arith.constant 0 : i32
    %c0_i32_1 = arith.constant 0 : i32
    return %c0_i32, %c0_i32_0 : i32, i32
  }
  func.func @transform_3(%arg0: i32) -> (i32, i32) {
    %c0_i32 = arith.constant 0 : i32
    %c0_i32_0 = arith.constant 0 : i32
    %c0_i32_1 = arith.constant 0 : i32
    return %c0_i32, %c0_i32_0 : i32, i32
  }
  func.func @transform_4(%arg0: i32) -> (i32, i32) {
    %c0_i32 = arith.constant 0 : i32
    %c0_i32_0 = arith.constant 0 : i32
    %c0_i32_1 = arith.constant 0 : i32
    return %c0_i32, %c0_i32_0 : i32, i32
  }
  func.func @transform_5(%arg0: i32) -> (i32, i32) {
    %c0_i32 = arith.constant 0 : i32
    %c0_i32_0 = arith.constant 0 : i32
    %c0_i32_1 = arith.constant 0 : i32
    return %c0_i32, %c0_i32_0 : i32, i32
  }
  func.func @transform_6(%arg0: i32) -> (i32, i32) {
    %c0_i32 = arith.constant 0 : i32
    %c0_i32_0 = arith.constant 0 : i32
    %c0_i32_1 = arith.constant 0 : i32
    return %c0_i32, %c0_i32_0 : i32, i32
  }
  func.func @transform_7(%arg0: i32) -> (i32, i32) {
    %c0_i32 = arith.constant 0 : i32
    %c0_i32_0 = arith.constant 0 : i32
    %c0_i32_1 = arith.constant 0 : i32
    return %c0_i32, %c0_i32_0 : i32, i32
  }
  func.func @transform_8(%arg0: i32) -> (i32, i32) {
    %c0_i32 = arith.constant 0 : i32
    %c0_i32_0 = arith.constant 0 : i32
    %c0_i32_1 = arith.constant 0 : i32
    return %c0_i32, %c0_i32_0 : i32, i32
  }
  func.func @transform_9(%arg0: i32) -> (i32, i32) {
    %c0_i32 = arith.constant 0 : i32
    %c0_i32_0 = arith.constant 0 : i32
    %c0_i32_1 = arith.constant 0 : i32
    return %c0_i32, %c0_i32_0 : i32, i32
  }
  func.func @transform_10(%arg0: i32) -> (i32, i32) {
    %c0_i32 = arith.constant 0 : i32
    %c0_i32_0 = arith.constant 0 : i32
    %c0_i32_1 = arith.constant 0 : i32
    return %c0_i32, %c0_i32_0 : i32, i32
  }
  func.func @transform_11(%arg0: i32) -> (i32, i32) {
    %c0_i32 = arith.constant 0 : i32
    %c0_i32_0 = arith.constant 0 : i32
    %c0_i32_1 = arith.constant 0 : i32
    return %c0_i32, %c0_i32_0 : i32, i32
  }
  func.func @transform_12(%arg0: i32) -> (i32, i32) {
    %c0_i32 = arith.constant 0 : i32
    %c0_i32_0 = arith.constant 0 : i32
    %c0_i32_1 = arith.constant 0 : i32
    return %c0_i32, %c0_i32_0 : i32, i32
  }
  func.func @transform_13(%arg0: i32) -> (i32, i32) {
    %c0_i32 = arith.constant 0 : i32
    %c0_i32_0 = arith.constant 0 : i32
    %c0_i32_1 = arith.constant 0 : i32
    return %c0_i32, %c0_i32_0 : i32, i32
  }
  func.func @transform_14(%arg0: i32) -> (i32, i32) {
    %c0_i32 = arith.constant 0 : i32
    %c0_i32_0 = arith.constant 0 : i32
    %c0_i32_1 = arith.constant 0 : i32
    return %c0_i32, %c0_i32_0 : i32, i32
  }
  func.func @transform_15(%arg0: i32) -> (i32, i32) {
    %c0_i32 = arith.constant 0 : i32
    %c0_i32_0 = arith.constant 0 : i32
    %c0_i32_1 = arith.constant 0 : i32
    return %c0_i32, %c0_i32_0 : i32, i32
  }
  func.func @transform_16(%arg0: i32) -> (i32, i32) {
    %c0_i32 = arith.constant 0 : i32
    %c0_i32_0 = arith.constant 0 : i32
    %c0_i32_1 = arith.constant 0 : i32
    return %c0_i32, %c0_i32_0 : i32, i32
  }
}

module attributes {stable_mosaic.version = 11 : i64} {
  func.func @_mm_bias_act_T_kernel(%arg0: i32, %arg1: memref<16x32xbf16, #tpu.memory_space<vmem>>, %arg2: memref<32x32xf32, #tpu.memory_space<vmem>>, %arg3: memref<16x1xf32, #tpu.memory_space<vmem>>, %arg4: memref<16x32xf32, #tpu.memory_space<vmem>>) attributes {dimension_semantics = [#tpu.dimension_semantics<arbitrary>], iteration_bounds = array<i64: 1>, scalar_prefetch = 0 : i64, scratch_operands = 0 : i64, tpu.core_type = #tpu.core_type<tc>, window_params = [{pipeline_mode = #tpu.pipeline_mode<synchronous>, transform_indices = @transform_0, window_bounds = array<i64: 16, 32>}, {pipeline_mode = #tpu.pipeline_mode<synchronous>, transform_indices = @transform_1, window_bounds = array<i64: 32, 32>}, {pipeline_mode = #tpu.pipeline_mode<synchronous>, transform_indices = @transform_2, window_bounds = array<i64: 16, 1>}, {pipeline_mode = #tpu.pipeline_mode<synchronous>, transform_indices = @transform_3, window_bounds = array<i64: 16, 32>}]} {
    %c0 = arith.constant 0 : index
    %c0_0 = arith.constant 0 : index
    %0 = vector.load %arg1[%c0, %c0_0] : memref<16x32xbf16, #tpu.memory_space<vmem>>, vector<16x32xbf16>
    %c0_1 = arith.constant 0 : index
    %c0_2 = arith.constant 0 : index
    %1 = vector.load %arg2[%c0_1, %c0_2] : memref<32x32xf32, #tpu.memory_space<vmem>>, vector<32x32xf32>
    %2 = arith.truncf %1 : vector<32x32xf32> to vector<32x32xbf16>
    %cst = arith.constant dense<0.000000e+00> : vector<16x32xf32>
    %3 = tpu.matmul %0, %2, %cst {dimension_numbers = #tpu.dot_dimension_numbers<[1], [0], [0], [1], [0, 0, 1, 1], [], []>} : vector<16x32xbf16>, vector<32x32xbf16>, vector<16x32xf32> -> vector<16x32xf32>
    %c0_3 = arith.constant 0 : index
    %c0_4 = arith.constant 0 : index
    %4 = vector.load %arg3[%c0_3, %c0_4] : memref<16x1xf32, #tpu.memory_space<vmem>>, vector<16x1xf32>
    %5 = vector.broadcast %4 : vector<16x1xf32> to vector<16x32xf32>
    %6 = arith.addf %3, %5 : vector<16x32xf32>
    %cst_5 = arith.constant 0.000000e+00 : f32
    %7 = vector.broadcast %cst_5 : f32 to vector<16x32xf32>
    %8 = arith.maximumf %6, %7 : vector<16x32xf32>
    %c0_6 = arith.constant 0 : index
    %c0_7 = arith.constant 0 : index
    %9 = vector.load %arg4[%c0_6, %c0_7] : memref<16x32xf32, #tpu.memory_space<vmem>>, vector<16x32xf32>
    tpu.vector_store %arg4[%c0_6, %c0_7], %8 {strides = array<i32>} : memref<16x32xf32, #tpu.memory_space<vmem>>, vector<16x32xf32>,
    return
  }
  func.func @transform_0(%arg0: i32) -> (i32, i32) {
    %c0_i32 = arith.constant 0 : i32
    %c0_i32_0 = arith.constant 0 : i32
    %c0_i32_1 = arith.constant 0 : i32
    return %c0_i32, %c0_i32_0 : i32, i32
  }
  func.func @transform_1(%arg0: i32) -> (i32, i32) {
    %c0_i32 = arith.constant 0 : i32
    %c0_i32_0 = arith.constant 0 : i32
    %c0_i32_1 = arith.constant 0 : i32
    return %c0_i32, %c0_i32_0 : i32, i32
  }
  func.func @transform_2(%arg0: i32) -> (i32, i32) {
    %c0_i32 = arith.constant 0 : i32
    %c0_i32_0 = arith.constant 0 : i32
    %c0_i32_1 = arith.constant 0 : i32
    return %c0_i32, %c0_i32_0 : i32, i32
  }
  func.func @transform_3(%arg0: i32) -> (i32, i32) {
    %c0_i32 = arith.constant 0 : i32
    %c0_i32_0 = arith.constant 0 : i32
    %c0_i32_1 = arith.constant 0 : i32
    return %c0_i32, %c0_i32_0 : i32, i32
  }
}

module attributes {stable_mosaic.version = 11 : i64} {
  func.func @_mm_bias_act_T_kernel(%arg0: i32, %arg1: memref<12x16xbf16, #tpu.memory_space<vmem>>, %arg2: memref<16x128xf32, #tpu.memory_space<vmem>>, %arg3: memref<12x1xf32, #tpu.memory_space<vmem>>, %arg4: memref<12x128xf32, #tpu.memory_space<vmem>>) attributes {dimension_semantics = [#tpu.dimension_semantics<arbitrary>], iteration_bounds = array<i64: 1>, scalar_prefetch = 0 : i64, scratch_operands = 0 : i64, tpu.core_type = #tpu.core_type<tc>, window_params = [{pipeline_mode = #tpu.pipeline_mode<synchronous>, transform_indices = @transform_0, window_bounds = array<i64: 12, 16>}, {pipeline_mode = #tpu.pipeline_mode<synchronous>, transform_indices = @transform_1, window_bounds = array<i64: 16, 128>}, {pipeline_mode = #tpu.pipeline_mode<synchronous>, transform_indices = @transform_2, window_bounds = array<i64: 12, 1>}, {pipeline_mode = #tpu.pipeline_mode<synchronous>, transform_indices = @transform_3, window_bounds = array<i64: 12, 128>}]} {
    %c0 = arith.constant 0 : index
    %c0_0 = arith.constant 0 : index
    %0 = vector.load %arg1[%c0, %c0_0] : memref<12x16xbf16, #tpu.memory_space<vmem>>, vector<12x16xbf16>
    %c0_1 = arith.constant 0 : index
    %c0_2 = arith.constant 0 : index
    %1 = vector.load %arg2[%c0_1, %c0_2] : memref<16x128xf32, #tpu.memory_space<vmem>>, vector<16x128xf32>
    %2 = arith.truncf %1 : vector<16x128xf32> to vector<16x128xbf16>
    %cst = arith.constant dense<0.000000e+00> : vector<12x128xf32>
    %3 = tpu.matmul %0, %2, %cst {dimension_numbers = #tpu.dot_dimension_numbers<[1], [0], [0], [1], [0, 0, 1, 1], [], []>} : vector<12x16xbf16>, vector<16x128xbf16>, vector<12x128xf32> -> vector<12x128xf32>
    %c0_3 = arith.constant 0 : index
    %c0_4 = arith.constant 0 : index
    %4 = vector.load %arg3[%c0_3, %c0_4] : memref<12x1xf32, #tpu.memory_space<vmem>>, vector<12x1xf32>
    %5 = vector.broadcast %4 : vector<12x1xf32> to vector<12x128xf32>
    %6 = arith.addf %3, %5 : vector<12x128xf32>
    %7 = arith.negf %6 : vector<12x128xf32>
    %8 = math.exp %7 : vector<12x128xf32>
    %cst_5 = arith.constant 1.000000e+00 : f32
    %9 = vector.broadcast %cst_5 : f32 to vector<12x128xf32>
    %10 = arith.addf %9, %8 : vector<12x128xf32>
    %11 = arith.divf %9, %10 : vector<12x128xf32>
    %c0_6 = arith.constant 0 : index
    %c0_7 = arith.constant 0 : index
    %12 = vector.load %arg4[%c0_6, %c0_7] : memref<12x128xf32, #tpu.memory_space<vmem>>, vector<12x128xf32>
    tpu.vector_store %arg4[%c0_6, %c0_7], %11 {strides = array<i32>} : memref<12x128xf32, #tpu.memory_space<vmem>>, vector<12x128xf32>,
    return
  }
  func.func @transform_0(%arg0: i32) -> (i32, i32) {
    %c0_i32 = arith.constant 0 : i32
    %c0_i32_0 = arith.constant 0 : i32
    %c0_i32_1 = arith.constant 0 : i32
    return %c0_i32, %c0_i32_0 : i32, i32
  }
  func.func @transform_1(%arg0: i32) -> (i32, i32) {
    %c0_i32 = arith.constant 0 : i32
    %c0_i32_0 = arith.constant 0 : i32
    %c0_i32_1 = arith.constant 0 : i32
    return %c0_i32, %c0_i32_0 : i32, i32
  }
  func.func @transform_2(%arg0: i32) -> (i32, i32) {
    %c0_i32 = arith.constant 0 : i32
    %c0_i32_0 = arith.constant 0 : i32
    %c0_i32_1 = arith.constant 0 : i32
    return %c0_i32, %c0_i32_0 : i32, i32
  }
  func.func @transform_3(%arg0: i32) -> (i32, i32) {
    %c0_i32 = arith.constant 0 : i32
    %c0_i32_0 = arith.constant 0 : i32
    %c0_i32_1 = arith.constant 0 : i32
    return %c0_i32, %c0_i32_0 : i32, i32
  }
}

</mosaic_0001>

<llo_original>
// kernel: b_encodeco_forward.5
$region0: #{b_encodeco_forward.5}
  #allocation0 [shape = 'u32[]', space=smem, size = 0x4, offset = 0x4, fixed_abs, tag = 'smem constant byte address 0x4 - core index']
  #allocation1 [shape = 'u32[144,128]{1,0:T(1,128)}', space=vmem, size = 0x12000, scoped, tag = 'internal scratch']
  %s0 = inlined_call_operand.vmem [shape: bf16[4,27], index: 0, kind: input, shape index: {}]
  %s1 = inlined_call_operand.vmem [shape: f32[27,128], index: 1, kind: input, shape index: {}]
  %s2 = inlined_call_operand.vmem [shape: f32[4,1], index: 2, kind: input, shape index: {}]
  %s3 = inlined_call_operand.vmem [shape: f32[4,128], index: 3, kind: output, shape index: {}]
  %s4 = sld [smem:[#allocation0]]
  $region22: #{b_encodeco_forward.5} parent=0
    _
  %s6 = ssub.s32 1, %s4
  %s7 = scalar_select 0, %s6, %s4
  // Predicated region
  $region2: #{b_encodeco_forward.5} parent=0 // pred_check
    _
  $region3: #{b_encodeco_forward.5} parent=0 // pred_check_branch
    %9 = sbr.rel (0) target = $region5
  $region4: #{b_encodeco_forward.5} parent=0 // pred_region
    _
  $region5: #{b_encodeco_forward.5} parent=0 // pred_fallthru
    _
  // Predicated region
  $region6: #{b_encodeco_forward.5} parent=0 // pred_check
    _
  $region7: #{b_encodeco_forward.5} parent=0 // pred_check_branch
    %11 = sbr.rel (0) target = $region9
  $region8: #{b_encodeco_forward.5} parent=0 // pred_region
    _
  $region9: #{b_encodeco_forward.5} parent=0 // pred_fallthru
    _
  // Predicated region
  $region10: #{b_encodeco_forward.5} parent=0 // pred_check
    _
  $region11: #{b_encodeco_forward.5} parent=0 // pred_check_branch
    %13 = sbr.rel (0) target = $region13
  $region12: #{b_encodeco_forward.5} parent=0 // pred_region
    _
  $region13: #{b_encodeco_forward.5} parent=0 // pred_fallthru
    _
  %v15 = vld [vmem:[%s0] sm:$0x3]
  %v16 = vld [vmem:[%s1] sm:$0xff]
  %v17 = vld [vmem:[%s1 + $0x8] sm:$0xff]
  %v18 = vld [vmem:[%s1 + $0x10] sm:$0xff]
  %v19 = vld [vmem:[%s1 + $0x18] sm:$0x7]
  %v20 = vpack.c.bf16 %v17, %v16
  %v21 = vpack.c.bf16 %v19, %v18
  %v22 = vld [vmem:[%s2] sm:$0xf]
  %24 = vset.pattern.permute.xlu0 0
  %25 = vperm.xlu0 %24, %v22
  %v26 = vpop.permute.xlu0 %25
  %vm28 = vcmask 220160
  %v30 = vsel %vm28, %v15, 0
  %vm32 = vcmask 1044480
  %vm33 = vcmask 1045504
  %v34 = vsel %vm32, 4294967295, 65535
  %v35 = vsel %vm33, %v34, 0
  %v37 = vand.u32 %v21, %v35
  %39 = vmatprep.subr.bf16.mxu0 0
  %40 = vmatpush1.bf16.msra.mxu0 %v20
  %41 = vmatprep.subr.bf16.mxu0 0
  %42 = vmatpush1.bf16.msra.mxu0 %v37
  %43 = vmatprep.subr.bf16.mxu0 0
  %44 = vmatpush1.bf16.msra.mxu0 0
  %45 = vmatprep.subr.bf16.mxu0 0
  %46 = vmatpush1.bf16.msra.mxu0 0
  %47 = vmatprep.subr.bf16.mxu0 0
  %48 = vmatpush1.bf16.msra.mxu0 0
  %49 = vmatprep.subr.bf16.mxu0 0
  %50 = vmatpush1.bf16.msra.mxu0 0
  %51 = vmatprep.subr.bf16.mxu0 0
  %52 = vmatpush1.bf16.msra.mxu0 0
  %53 = vmatprep.subr.bf16.mxu0 0
  %54 = vmatpush1.bf16.msra.mxu0 0
  %55 = vmatprep.subr.bf16.mxu0 0
  %56 = vmatpush1.bf16.msra.mxu0 0
  %57 = vmatprep.subr.bf16.mxu0 0
  %58 = vmatpush1.bf16.msra.mxu0 0
  %59 = vmatprep.subr.bf16.mxu0 0
  %60 = vmatpush1.bf16.msra.mxu0 0
  %61 = vmatprep.subr.bf16.mxu0 0
  %62 = vmatpush1.bf16.msra.mxu0 0
  %63 = vmatprep.subr.bf16.mxu0 0
  %64 = vmatpush1.bf16.msra.mxu0 0
  %65 = vmatprep.subr.bf16.mxu0 0
  %66 = vmatpush1.bf16.msra.mxu0 0
  %67 = vmatprep.subr.bf16.mxu0 0
  %68 = vmatpush1.bf16.msra.mxu0 0
  %69 = vmatprep.subr.bf16.mxu0 0
  %70 = vmatpush1.bf16.msra.mxu0 0
  %71 = vmatprep.mubr.bf16.mxu0 0
  %72 = vmatmul.mubr.bf16.gmra.mrb[0].mxu0 %v30
  %v73 = vpop.f32.mrb[0].mxu0
  %v74 = vadd.f32 %v26, %v73
  %v75 = vpop.f32.mrb[0].mxu0
  %v76 = vpop.f32.mrb[0].mxu0
  %v77 = vpop.f32.mrb[0].mxu0
  %78 = vdwg.mxu0
  %v79 = vmax.f32 %v74, 0.0
  %80 = vst [vmem:[%s3] sm:$0xf] %v79
  // Predicated region
  $region14: #{b_encodeco_forward.5} parent=0 // pred_check
    _
  $region15: #{b_encodeco_forward.5} parent=0 // pred_check_branch
    %82 = sbr.rel (0) target = $region17
  $region16: #{b_encodeco_forward.5} parent=0 // pred_region
    _
  $region17: #{b_encodeco_forward.5} parent=0 // pred_fallthru
    _
  // Predicated region
  $region18: #{b_encodeco_forward.5} parent=0 // pred_check
    _
  $region19: #{b_encodeco_forward.5} parent=0 // pred_check_branch
    %84 = sbr.rel (0) target = $region21
  $region20: #{b_encodeco_forward.5} parent=0 // pred_region
    _
  $region21: #{b_encodeco_forward.5} parent=0 // pred_fallthru
    _

// kernel: b_encodeco_forward.6
$region0: #{b_encodeco_forward.6}
  #allocation0 [shape = 'u32[]', space=smem, size = 0x4, offset = 0x4, fixed_abs, tag = 'smem constant byte address 0x4 - core index']
  #allocation1 [shape = 'u32[144,128]{1,0:T(1,128)}', space=vmem, size = 0x12000, scoped, tag = 'internal scratch']
  %s0 = inlined_call_operand.vmem [shape: bf16[8,36], index: 0, kind: input, shape index: {}]
  %s1 = inlined_call_operand.vmem [shape: f32[36,32], index: 1, kind: input, shape index: {}]
  %s2 = inlined_call_operand.vmem [shape: f32[8,1], index: 2, kind: input, shape index: {}]
  %s3 = inlined_call_operand.vmem [shape: f32[8,32], index: 3, kind: output, shape index: {}]
  %s4 = sld [smem:[#allocation0]]
  $region22: #{b_encodeco_forward.6} parent=0
    _
  %s6 = ssub.s32 1, %s4
  %s7 = scalar_select 0, %s6, %s4
  // Predicated region
  $region2: #{b_encodeco_forward.6} parent=0 // pred_check
    _
  $region3: #{b_encodeco_forward.6} parent=0 // pred_check_branch
    %9 = sbr.rel (0) target = $region5
  $region4: #{b_encodeco_forward.6} parent=0 // pred_region
    _
  $region5: #{b_encodeco_forward.6} parent=0 // pred_fallthru
    _
  // Predicated region
  $region6: #{b_encodeco_forward.6} parent=0 // pred_check
    _
  $region7: #{b_encodeco_forward.6} parent=0 // pred_check_branch
    %11 = sbr.rel (0) target = $region9
  $region8: #{b_encodeco_forward.6} parent=0 // pred_region
    _
  $region9: #{b_encodeco_forward.6} parent=0 // pred_fallthru
    _
  // Predicated region
  $region10: #{b_encodeco_forward.6} parent=0 // pred_check
    _
  $region11: #{b_encodeco_forward.6} parent=0 // pred_check_branch
    %13 = sbr.rel (0) target = $region13
  $region12: #{b_encodeco_forward.6} parent=0 // pred_region
    _
  $region13: #{b_encodeco_forward.6} parent=0 // pred_fallthru
    _
  %v15 = vld [vmem:[%s0] sm:$0xf]
  %v16 = vld [vmem:[%s1] sm:$0xff]
  %v17 = vld [vmem:[%s1 + $0x8] sm:$0xff]
  %v18 = vld [vmem:[%s1 + $0x10] sm:$0xff]
  %v19 = vld [vmem:[%s1 + $0x18] sm:$0xff]
  %v20 = vld [vmem:[%s1 + $0x20] sm:$0xf]
  %v21 = vpack.c.bf16 %v17, %v16
  %v22 = vpack.c.bf16 %v19, %v18
  %v23 = vpack.c.bf16 %v20, %v20
  %v24 = vld [vmem:[%s2] sm:$0xff]
  %26 = vset.pattern.permute.xlu0 0
  %27 = vperm.xlu0 %26, %v24
  %v28 = vpop.permute.xlu0 %27
  %vm30 = vcmask 293888
  %v32 = vsel %vm30, %v15, 0
  %vm34 = vcmask 1041408
  %v36 = vsel %vm34, %v23, 0
  %38 = vmatprep.subr.bf16.mxu0 0
  %39 = vmatpush1.bf16.msra.mxu0 %v21
  %40 = vmatprep.subr.bf16.mxu0 0
  %41 = vmatpush1.bf16.msra.mxu0 %v22
  %42 = vmatprep.subr.bf16.mxu0 0
  %43 = vmatpush1.bf16.msra.mxu0 %v36
  %44 = vmatprep.subr.bf16.mxu0 0
  %45 = vmatpush1.bf16.msra.mxu0 0
  %46 = vmatprep.subr.bf16.mxu0 0
  %47 = vmatpush1.bf16.msra.mxu0 0
  %48 = vmatprep.subr.bf16.mxu0 0
  %49 = vmatpush1.bf16.msra.mxu0 0
  %50 = vmatprep.subr.bf16.mxu0 0
  %51 = vmatpush1.bf16.msra.mxu0 0
  %52 = vmatprep.subr.bf16.mxu0 0
  %53 = vmatpush1.bf16.msra.mxu0 0
  %54 = vmatprep.subr.bf16.mxu0 0
  %55 = vmatpush1.bf16.msra.mxu0 0
  %56 = vmatprep.subr.bf16.mxu0 0
  %57 = vmatpush1.bf16.msra.mxu0 0
  %58 = vmatprep.subr.bf16.mxu0 0
  %59 = vmatpush1.bf16.msra.mxu0 0
  %60 = vmatprep.subr.bf16.mxu0 0
  %61 = vmatpush1.bf16.msra.mxu0 0
  %62 = vmatprep.subr.bf16.mxu0 0
  %63 = vmatpush1.bf16.msra.mxu0 0
  %64 = vmatprep.subr.bf16.mxu0 0
  %65 = vmatpush1.bf16.msra.mxu0 0
  %66 = vmatprep.subr.bf16.mxu0 0
  %67 = vmatpush1.bf16.msra.mxu0 0
  %68 = vmatprep.subr.bf16.mxu0 0
  %69 = vmatpush1.bf16.msra.mxu0 0
  %70 = vmatprep.mubr.bf16.mxu0 0
  %71 = vmatmul.mubr.bf16.gmra.mrb[0].mxu0 %v32
  %v72 = vpop.f32.mrb[0].mxu0
  %v73 = vadd.f32 %v28, %v72
  %v74 = vpop.f32.mrb[0].mxu0
  %v75 = vpop.f32.mrb[0].mxu0
  %v76 = vpop.f32.mrb[0].mxu0
  %77 = vdwg.mxu0
  %v78 = vmax.f32 %v73, 0.0
  %vm79 = vcmask 261120
  %80 = vst.msk [vmem:[%s3] sm:$0xff] %vm79, %v78
  // Predicated region
  $region14: #{b_encodeco_forward.6} parent=0 // pred_check
    _
  $region15: #{b_encodeco_forward.6} parent=0 // pred_check_branch
    %82 = sbr.rel (0) target = $region17
  $region16: #{b_encodeco_forward.6} parent=0 // pred_region
    _
  $region17: #{b_encodeco_forward.6} parent=0 // pred_fallthru
    _
  // Predicated region
  $region18: #{b_encodeco_forward.6} parent=0 // pred_check
    _
  $region19: #{b_encodeco_forward.6} parent=0 // pred_check_branch
    %84 = sbr.rel (0) target = $region21
  $region20: #{b_encodeco_forward.6} parent=0 // pred_region
    _
  $region21: #{b_encodeco_forward.6} parent=0 // pred_fallthru
    _

// kernel: b_encodeco_forward.7
$region0: #{b_encodeco_forward.7}
  #allocation0 [shape = 'u32[]', space=smem, size = 0x4, offset = 0x4, fixed_abs, tag = 'smem constant byte address 0x4 - core index']
  #allocation1 [shape = 'u32[144,128]{1,0:T(1,128)}', space=vmem, size = 0x12000, scoped, tag = 'internal scratch']
  %s0 = inlined_call_operand.vmem [shape: f32[2,128], index: 0, kind: input, shape index: {}]
  %s1 = inlined_call_operand.vmem [shape: f32[2,128], index: 1, kind: input, shape index: {}]
  %s2 = inlined_call_operand.vmem [shape: bf16[128,64], index: 2, kind: input, shape index: {}]
  %s3 = inlined_call_operand.vmem [shape: f32[1,64], index: 3, kind: input, shape index: {}]
  %s4 = inlined_call_operand.vmem [shape: bf16[64,128], index: 4, kind: input, shape index: {}]
  %s5 = inlined_call_operand.vmem [shape: f32[1,128], index: 5, kind: input, shape index: {}]
  %s6 = inlined_call_operand.vmem [shape: bf16[128,128], index: 6, kind: input, shape index: {}]
  %s7 = inlined_call_operand.vmem [shape: f32[1,128], index: 7, kind: input, shape index: {}]
  %s8 = inlined_call_operand.vmem [shape: bf16[128,256], index: 8, kind: input, shape index: {}]
  %s9 = inlined_call_operand.vmem [shape: f32[1,256], index: 9, kind: input, shape index: {}]
  %s10 = inlined_call_operand.vmem [shape: bf16[128,64], index: 10, kind: input, shape index: {}]
  %s11 = inlined_call_operand.vmem [shape: f32[1,64], index: 11, kind: input, shape index: {}]
  %s12 = inlined_call_operand.vmem [shape: bf16[64,128], index: 12, kind: input, shape index: {}]
  %s13 = inlined_call_operand.vmem [shape: f32[1,128], index: 13, kind: input, shape index: {}]
  %s14 = inlined_call_operand.vmem [shape: f32[2,128], index: 14, kind: output, shape index: {0}]
  %s15 = inlined_call_operand.hbm [shape: f32[2,128], index: 15, kind: output, shape index: {1}]
  %s16 = inlined_call_operand.hbm [shape: f32[2,128], index: 16, kind: output, shape index: {2}]
  %17 = xla_tuple %s14, %s15, %s16
  %s18 = sld [smem:[#allocation0]]
  $region82: #{b_encodeco_forward.7} parent=0
    _
  %s20 = ssub.s32 1, %s18
  %s21 = scalar_select 0, %s20, %s18
  $region1: #{b_encodeco_forward.7} parent=0
    #allocation2 [shape = 'u8[1024]{0}', space=vmem, size = 0x400, scoped, tag = 'output window, operand 1, single buffered']
    #allocation3 [shape = 's32[1]{0}', space=sflag, size = 0x4, scoped, tag = 'scoped memory for b_encodeco_forward.7']
    #allocation4 [shape = 'u8[1024]{0}', space=vmem, size = 0x400, scoped, tag = 'output window, operand 2, single buffered']
    #allocation5 [shape = 's32[1]{0}', space=sflag, size = 0x4, scoped, tag = 'scoped memory for b_encodeco_forward.7']
    %22 = vsyncpa [#allocation3], 0
    %23 = vsyncpa [#allocation5], 0
    // Predicated region
    $region2: #{b_encodeco_forward.7} parent=1 // pred_check
      _
    $region3: #{b_encodeco_forward.7} parent=1 // pred_check_branch
      %25 = sbr.rel (0) target = $region5
    $region4: #{b_encodeco_forward.7} parent=1 // pred_region
      _
    $region5: #{b_encodeco_forward.7} parent=1 // pred_fallthru
      _
    // Predicated region
    $region6: #{b_encodeco_forward.7} parent=1 // pred_check
      _
    $region7: #{b_encodeco_forward.7} parent=1 // pred_check_branch
      %27 = sbr.rel (0) target = $region9
    $region8: #{b_encodeco_forward.7} parent=1 // pred_region
      _
    $region9: #{b_encodeco_forward.7} parent=1 // pred_fallthru
      _
    // Predicated region
    $region10: #{b_encodeco_forward.7} parent=1 // pred_check
      _
    $region11: #{b_encodeco_forward.7} parent=1 // pred_check_branch
      %29 = sbr.rel (0) target = $region13
    $region12: #{b_encodeco_forward.7} parent=1 // pred_region
      _
    $region13: #{b_encodeco_forward.7} parent=1 // pred_fallthru
      _
    // Predicated region
    $region14: #{b_encodeco_forward.7} parent=1 // pred_check
      _
    $region15: #{b_encodeco_forward.7} parent=1 // pred_check_branch
      %31 = sbr.rel (0) target = $region17
    $region16: #{b_encodeco_forward.7} parent=1 // pred_region
      _
    $region17: #{b_encodeco_forward.7} parent=1 // pred_fallthru
      _
    // Predicated region
    $region18: #{b_encodeco_forward.7} parent=1 // pred_check
      _
    $region19: #{b_encodeco_forward.7} parent=1 // pred_check_branch
      %33 = sbr.rel (0) target = $region21
    $region20: #{b_encodeco_forward.7} parent=1 // pred_region
      _
    $region21: #{b_encodeco_forward.7} parent=1 // pred_fallthru
      _
    // Predicated region
    $region22: #{b_encodeco_forward.7} parent=1 // pred_check
      _
    $region23: #{b_encodeco_forward.7} parent=1 // pred_check_branch
      %35 = sbr.rel (0) target = $region25
    $region24: #{b_encodeco_forward.7} parent=1 // pred_region
      _
    $region25: #{b_encodeco_forward.7} parent=1 // pred_fallthru
      _
    // Predicated region
    $region26: #{b_encodeco_forward.7} parent=1 // pred_check
      _
    $region27: #{b_encodeco_forward.7} parent=1 // pred_check_branch
      %37 = sbr.rel (0) target = $region29
    $region28: #{b_encodeco_forward.7} parent=1 // pred_region
      _
    $region29: #{b_encodeco_forward.7} parent=1 // pred_fallthru
      _
    // Predicated region
    $region30: #{b_encodeco_forward.7} parent=1 // pred_check
      _
    $region31: #{b_encodeco_forward.7} parent=1 // pred_check_branch
      %39 = sbr.rel (0) target = $region33
    $region32: #{b_encodeco_forward.7} parent=1 // pred_region
      _
    $region33: #{b_encodeco_forward.7} parent=1 // pred_fallthru
      _
    // Predicated region
    $region34: #{b_encodeco_forward.7} parent=1 // pred_check
      _
    $region35: #{b_encodeco_forward.7} parent=1 // pred_check_branch
      %41 = sbr.rel (0) target = $region37
    $region36: #{b_encodeco_forward.7} parent=1 // pred_region
      _
    $region37: #{b_encodeco_forward.7} parent=1 // pred_fallthru
      _
    // Predicated region
    $region38: #{b_encodeco_forward.7} parent=1 // pred_check
      _
    $region39: #{b_encodeco_forward.7} parent=1 // pred_check_branch
      %43 = sbr.rel (0) target = $region41
    $region40: #{b_encodeco_forward.7} parent=1 // pred_region
      _
    $region41: #{b_encodeco_forward.7} parent=1 // pred_fallthru
      _
    // Predicated region
    $region42: #{b_encodeco_forward.7} parent=1 // pred_check
      _
    $region43: #{b_encodeco_forward.7} parent=1 // pred_check_branch
      %45 = sbr.rel (0) target = $region45
    $region44: #{b_encodeco_forward.7} parent=1 // pred_region
      _
    $region45: #{b_encodeco_forward.7} parent=1 // pred_fallthru
      _
    // Predicated region
    $region46: #{b_encodeco_forward.7} parent=1 // pred_check
      _
    $region47: #{b_encodeco_forward.7} parent=1 // pred_check_branch
      %47 = sbr.rel (0) target = $region49
    $region48: #{b_encodeco_forward.7} parent=1 // pred_region
      _
    $region49: #{b_encodeco_forward.7} parent=1 // pred_fallthru
      _
    // Predicated region
    $region50: #{b_encodeco_forward.7} parent=1 // pred_check
      _
    $region51: #{b_encodeco_forward.7} parent=1 // pred_check_branch
      %49 = sbr.rel (0) target = $region53
    $region52: #{b_encodeco_forward.7} parent=1 // pred_region
      _
    $region53: #{b_encodeco_forward.7} parent=1 // pred_fallthru
      _
    // Predicated region
    $region54: #{b_encodeco_forward.7} parent=1 // pred_check
      _
    $region55: #{b_encodeco_forward.7} parent=1 // pred_check_branch
      %51 = sbr.rel (0) target = $region57
    $region56: #{b_encodeco_forward.7} parent=1 // pred_region
      _
    $region57: #{b_encodeco_forward.7} parent=1 // pred_fallthru
      _
    %v53 = vld [vmem:[%s0] sm:$0x3]
    %v54 = vpack.c.bf16 %v53, %v53
    %v55 = vld [vmem:[%s2] sm:$0xf]
    %v56 = vld [vmem:[%s2 + $0x4] sm:$0xf]
    %v57 = vld [vmem:[%s2 + $0x8] sm:$0xf]
    %v58 = vld [vmem:[%s2 + $0xc] sm:$0xf]
    %v59 = vld [vmem:[%s2 + $0x10] sm:$0xf]
    %v60 = vld [vmem:[%s2 + $0x14] sm:$0xf]
    %v61 = vld [vmem:[%s2 + $0x18] sm:$0xf]
    %v62 = vld [vmem:[%s2 + $0x1c] sm:$0xf]
    %v63 = vld [vmem:[%s2 + $0x20] sm:$0xf]
    %v64 = vld [vmem:[%s2 + $0x24] sm:$0xf]
    %v65 = vld [vmem:[%s2 + $0x28] sm:$0xf]
    %v66 = vld [vmem:[%s2 + $0x2c] sm:$0xf]
    %v67 = vld [vmem:[%s2 + $0x30] sm:$0xf]
    %v68 = vld [vmem:[%s2 + $0x34] sm:$0xf]
    %v69 = vld [vmem:[%s2 + $0x38] sm:$0xf]
    %v70 = vld [vmem:[%s2 + $0x3c] sm:$0xf]
    %v71 = vld [vmem:[%s3] sm:$0x1]
    %v73 = vlaneseq
    %v74 = vshrl.u32 %v73, 7
    %v75 = vsub.s32 0, %v74
    %v76 = vrot.slane %v71, %v75
    %v94 = vunpack.c.l.b16 %v55
    %v95 = vunpack.c.l.b16 %v56
    %v96 = vunpack.c.l.b16 %v57
    %v97 = vunpack.c.l.b16 %v58
    %v98 = vunpack.c.l.b16 %v59
    %v99 = vunpack.c.l.b16 %v60
    %v100 = vunpack.c.l.b16 %v61
    %v101 = vunpack.c.l.b16 %v62
    %v102 = vunpack.c.l.b16 %v63
    %v103 = vunpack.c.l.b16 %v64
    %v104 = vunpack.c.l.b16 %v65
    %v105 = vunpack.c.l.b16 %v66
    %v106 = vunpack.c.l.b16 %v67
    %v107 = vunpack.c.l.b16 %v68
    %v108 = vunpack.c.l.b16 %v69
    %v109 = vunpack.c.l.b16 %v70
    %v110 = vpack.c.b16 %v95, %v94
    %v111 = vpack.c.b16 %v97, %v96
    %v112 = vpack.c.b16 %v99, %v98
    %v113 = vpack.c.b16 %v101, %v100
    %v114 = vpack.c.b16 %v103, %v102
    %v115 = vpack.c.b16 %v105, %v104
    %v116 = vpack.c.b16 %v107, %v106
    %v117 = vpack.c.b16 %v109, %v108
    %126 = vmatprep.subr.bf16.mxu0 0
    %127 = vmatpush1.bf16.msra.mxu0 %v110
    %128 = vmatprep.subr.bf16.mxu0 0
    %129 = vmatpush1.bf16.msra.mxu0 %v111
    %130 = vmatprep.subr.bf16.mxu0 0
    %131 = vmatpush1.bf16.msra.mxu0 %v112
    %132 = vmatprep.subr.bf16.mxu0 0
    %133 = vmatpush1.bf16.msra.mxu0 %v113
    %134 = vmatprep.subr.bf16.mxu0 0
    %135 = vmatpush1.bf16.msra.mxu0 %v114
    %136 = vmatprep.subr.bf16.mxu0 0
    %137 = vmatpush1.bf16.msra.mxu0 %v115
    %138 = vmatprep.subr.bf16.mxu0 0
    %139 = vmatpush1.bf16.msra.mxu0 %v116
    %140 = vmatprep.subr.bf16.mxu0 0
    %141 = vmatpush1.bf16.msra.mxu0 %v117
    %142 = vmatprep.subr.bf16.mxu0 0
    %143 = vmatpush1.bf16.msra.mxu0 0
    %144 = vmatprep.subr.bf16.mxu0 0
    %145 = vmatpush1.bf16.msra.mxu0 0
    %146 = vmatprep.subr.bf16.mxu0 0
    %147 = vmatpush1.bf16.msra.mxu0 0
    %148 = vmatprep.subr.bf16.mxu0 0
    %149 = vmatpush1.bf16.msra.mxu0 0
    %150 = vmatprep.subr.bf16.mxu0 0
    %151 = vmatpush1.bf16.msra.mxu0 0
    %152 = vmatprep.subr.bf16.mxu0 0
    %153 = vmatpush1.bf16.msra.mxu0 0
    %154 = vmatprep.subr.bf16.mxu0 0
    %155 = vmatpush1.bf16.msra.mxu0 0
    %156 = vmatprep.subr.bf16.mxu0 0
    %157 = vmatpush1.bf16.msra.mxu0 0
    %158 = vmatprep.mubr.bf16.mxu0 0
    %159 = vmatmul.mubr.bf16.gmra.mrb[0].mxu0 %v54
    %v160 = vpop.f32.mrb[0].mxu0
    %v161 = vadd.f32 %v76, %v160
    %v162 = vpop.f32.mrb[0].mxu0
    %v163 = vpop.f32.mrb[0].mxu0
    %v164 = vpop.f32.mrb[0].mxu0
    %165 = vdwg.mxu0
    %v166 = vmax.f32 %v161, 0.0
    %v167 = vpack.c.bf16 %v166, %v166
    %v168 = vld [vmem:[%s4] sm:$0xf]
    %v169 = vld [vmem:[%s4 + $0x4] sm:$0xf]
    %v170 = vld [vmem:[%s4 + $0x8] sm:$0xf]
    %v171 = vld [vmem:[%s4 + $0xc] sm:$0xf]
    %v172 = vld [vmem:[%s4 + $0x10] sm:$0xf]
    %v173 = vld [vmem:[%s4 + $0x14] sm:$0xf]
    %v174 = vld [vmem:[%s4 + $0x18] sm:$0xf]
    %v175 = vld [vmem:[%s4 + $0x1c] sm:$0xf]
    %v176 = vld [vmem:[%s5] sm:$0x1]
    %v178 = vlaneseq
    %v179 = vshrl.u32 %v178, 7
    %v180 = vsub.s32 0, %v179
    %v181 = vrot.slane %v176, %v180
    %v191 = vunpack.c.l.b16 %v168
    %v192 = vunpack.c.l.b16 %v169
    %v193 = vunpack.c.l.b16 %v170
    %v194 = vunpack.c.l.b16 %v171
    %v195 = vunpack.c.l.b16 %v172
    %v196 = vunpack.c.l.b16 %v173
    %v197 = vunpack.c.l.b16 %v174
    %v198 = vunpack.c.l.b16 %v175
    %v199 = vpack.c.b16 %v192, %v191
    %v200 = vpack.c.b16 %v194, %v193
    %v201 = vpack.c.b16 %v196, %v195
    %v202 = vpack.c.b16 %v198, %v197
    %vm207 = vcmask 523264
    %v209 = vsel %vm207, %v167, 0
    %211 = vmatprep.subr.bf16.mxu0 0
    %212 = vmatpush1.bf16.msra.mxu0 %v199
    %213 = vmatprep.subr.bf16.mxu0 0
    %214 = vmatpush1.bf16.msra.mxu0 %v200
    %215 = vmatprep.subr.bf16.mxu0 0
    %216 = vmatpush1.bf16.msra.mxu0 %v201
    %217 = vmatprep.subr.bf16.mxu0 0
    %218 = vmatpush1.bf16.msra.mxu0 %v202
    %219 = vmatprep.subr.bf16.mxu0 0
    %220 = vmatpush1.bf16.msra.mxu0 0
    %221 = vmatprep.subr.bf16.mxu0 0
    %222 = vmatpush1.bf16.msra.mxu0 0
    %223 = vmatprep.subr.bf16.mxu0 0
    %224 = vmatpush1.bf16.msra.mxu0 0
    %225 = vmatprep.subr.bf16.mxu0 0
    %226 = vmatpush1.bf16.msra.mxu0 0
    %227 = vmatprep.subr.bf16.mxu0 0
    %228 = vmatpush1.bf16.msra.mxu0 0
    %229 = vmatprep.subr.bf16.mxu0 0
    %230 = vmatpush1.bf16.msra.mxu0 0
    %231 = vmatprep.subr.bf16.mxu0 0
    %232 = vmatpush1.bf16.msra.mxu0 0
    %233 = vmatprep.subr.bf16.mxu0 0
    %234 = vmatpush1.bf16.msra.mxu0 0
    %235 = vmatprep.subr.bf16.mxu0 0
    %236 = vmatpush1.bf16.msra.mxu0 0
    %237 = vmatprep.subr.bf16.mxu0 0
    %238 = vmatpush1.bf16.msra.mxu0 0
    %239 = vmatprep.subr.bf16.mxu0 0
    %240 = vmatpush1.bf16.msra.mxu0 0
    %241 = vmatprep.subr.bf16.mxu0 0
    %242 = vmatpush1.bf16.msra.mxu0 0
    %243 = vmatprep.mubr.bf16.mxu0 0
    %244 = vmatmul.mubr.bf16.gmra.mrb[0].mxu0 %v209
    %v245 = vpop.f32.mrb[0].mxu0
    %v246 = vadd.f32 %v181, %v245
    %v247 = vpop.f32.mrb[0].mxu0
    %v248 = vpop.f32.mrb[0].mxu0
    %v249 = vpop.f32.mrb[0].mxu0
    %250 = vdwg.mxu0
    %v251 = vpack.c.bf16 %v246, %v246
    %v252 = vld [vmem:[%s6] sm:$0xf]
    %v253 = vld [vmem:[%s6 + $0x4] sm:$0xf]
    %v254 = vld [vmem:[%s6 + $0x8] sm:$0xf]
    %v255 = vld [vmem:[%s6 + $0xc] sm:$0xf]
    %v256 = vld [vmem:[%s6 + $0x10] sm:$0xf]
    %v257 = vld [vmem:[%s6 + $0x14] sm:$0xf]
    %v258 = vld [vmem:[%s6 + $0x18] sm:$0xf]
    %v259 = vld [vmem:[%s6 + $0x1c] sm:$0xf]
    %v260 = vld [vmem:[%s6 + $0x20] sm:$0xf]
    %v261 = vld [vmem:[%s6 + $0x24] sm:$0xf]
    %v262 = vld [vmem:[%s6 + $0x28] sm:$0xf]
    %v263 = vld [vmem:[%s6 + $0x2c] sm:$0xf]
    %v264 = vld [vmem:[%s6 + $0x30] sm:$0xf]
    %v265 = vld [vmem:[%s6 + $0x34] sm:$0xf]
    %v266 = vld [vmem:[%s6 + $0x38] sm:$0xf]
    %v267 = vld [vmem:[%s6 + $0x3c] sm:$0xf]
    %v268 = vld [vmem:[%s7] sm:$0x1]
    %v270 = vlaneseq
    %v271 = vshrl.u32 %v270, 7
    %v272 = vsub.s32 0, %v271
    %v273 = vrot.slane %v268, %v272
    %v291 = vunpack.c.l.b16 %v252
    %v292 = vunpack.c.l.b16 %v253
    %v293 = vunpack.c.l.b16 %v254
    %v294 = vunpack.c.l.b16 %v255
    %v295 = vunpack.c.l.b16 %v256
    %v296 = vunpack.c.l.b16 %v257
    %v297 = vunpack.c.l.b16 %v258
    %v298 = vunpack.c.l.b16 %v259
    %v299 = vunpack.c.l.b16 %v260
    %v300 = vunpack.c.l.b16 %v261
    %v301 = vunpack.c.l.b16 %v262
    %v302 = vunpack.c.l.b16 %v263
    %v303 = vunpack.c.l.b16 %v264
    %v304 = vunpack.c.l.b16 %v265
    %v305 = vunpack.c.l.b16 %v266
    %v306 = vunpack.c.l.b16 %v267
    %v307 = vpack.c.b16 %v292, %v291
    %v308 = vpack.c.b16 %v294, %v293
    %v309 = vpack.c.b16 %v296, %v295
    %v310 = vpack.c.b16 %v298, %v297
    %v311 = vpack.c.b16 %v300, %v299
    %v312 = vpack.c.b16 %v302, %v301
    %v313 = vpack.c.b16 %v304, %v303
    %v314 = vpack.c.b16 %v306, %v305
    %323 = vmatprep.subr.bf16.mxu0 0
    %324 = vmatpush1.bf16.msra.mxu0 %v307
    %325 = vmatprep.subr.bf16.mxu0 0
    %326 = vmatpush1.bf16.msra.mxu0 %v308
    %327 = vmatprep.subr.bf16.mxu0 0
    %328 = vmatpush1.bf16.msra.mxu0 %v309
    %329 = vmatprep.subr.bf16.mxu0 0
    %330 = vmatpush1.bf16.msra.mxu0 %v310
    %331 = vmatprep.subr.bf16.mxu0 0
    %332 = vmatpush1.bf16.msra.mxu0 %v311
    %333 = vmatprep.subr.bf16.mxu0 0
    %334 = vmatpush1.bf16.msra.mxu0 %v312
    %335 = vmatprep.subr.bf16.mxu0 0
    %336 = vmatpush1.bf16.msra.mxu0 %v313
    %337 = vmatprep.subr.bf16.mxu0 0
    %338 = vmatpush1.bf16.msra.mxu0 %v314
    %339 = vmatprep.subr.bf16.mxu0 0
    %340 = vmatpush1.bf16.msra.mxu0 0
    %341 = vmatprep.subr.bf16.mxu0 0
    %342 = vmatpush1.bf16.msra.mxu0 0
    %343 = vmatprep.subr.bf16.mxu0 0
    %344 = vmatpush1.bf16.msra.mxu0 0
    %345 = vmatprep.subr.bf16.mxu0 0
    %346 = vmatpush1.bf16.msra.mxu0 0
    %347 = vmatprep.subr.bf16.mxu0 0
    %348 = vmatpush1.bf16.msra.mxu0 0
    %349 = vmatprep.subr.bf16.mxu0 0
    %350 = vmatpush1.bf16.msra.mxu0 0
    %351 = vmatprep.subr.bf16.mxu0 0
    %352 = vmatpush1.bf16.msra.mxu0 0
    %353 = vmatprep.subr.bf16.mxu0 0
    %354 = vmatpush1.bf16.msra.mxu0 0
    %355 = vmatprep.mubr.bf16.mxu0 0
    %356 = vmatmul.mubr.bf16.gmra.mrb[0].mxu0 %v251
    %v357 = vpop.f32.mrb[0].mxu0
    %v358 = vadd.f32 %v273, %v357
    %v359 = vpop.f32.mrb[0].mxu0
    %v360 = vpop.f32.mrb[0].mxu0
    %v361 = vpop.f32.mrb[0].mxu0
    %362 = vdwg.mxu0
    %v363 = vmax.f32 %v358, 0.0
    %v364 = vpack.c.bf16 %v363, %v363
    %v365 = vld [vmem:[%s8] sm:$0xff]
    %v366 = vld [vmem:[%s8 + $0x8] sm:$0xff]
    %v367 = vld [vmem:[%s8 + $0x10] sm:$0xff]
    %v368 = vld [vmem:[%s8 + $0x18] sm:$0xff]
    %v369 = vld [vmem:[%s8 + $0x20] sm:$0xff]
    %v370 = vld [vmem:[%s8 + $0x28] sm:$0xff]
    %v371 = vld [vmem:[%s8 + $0x30] sm:$0xff]
    %v372 = vld [vmem:[%s8 + $0x38] sm:$0xff]
    %v373 = vld [vmem:[%s8 + $0x40] sm:$0xff]
    %v374 = vld [vmem:[%s8 + $0x48] sm:$0xff]
    %v375 = vld [vmem:[%s8 + $0x50] sm:$0xff]
    %v376 = vld [vmem:[%s8 + $0x58] sm:$0xff]
    %v377 = vld [vmem:[%s8 + $0x60] sm:$0xff]
    %v378 = vld [vmem:[%s8 + $0x68] sm:$0xff]
    %v379 = vld [vmem:[%s8 + $0x70] sm:$0xff]
    %v380 = vld [vmem:[%s8 + $0x78] sm:$0xff]
    %v381 = vld [vmem:[%s9] sm:$0x3]
    %v383 = vlaneseq
    %v384 = vshrl.u32 %v383, 7
    %v385 = vsub.s32 0, %v384
    %v386 = vrot.slane %v381, %v385
    %v387 = vlaneseq
    %v388 = vshrl.u32 %v387, 7
    %v389 = vsub.s32 1, %v388
    %v390 = vrot.slane %v381, %v389
    %v409 = vunpack.c.l.b16 %v365
    %v410 = vunpack.c.h.b16 %v365
    %v411 = vunpack.c.l.b16 %v366
    %v412 = vunpack.c.h.b16 %v366
    %v413 = vunpack.c.l.b16 %v367
    %v414 = vunpack.c.h.b16 %v367
    %v415 = vunpack.c.l.b16 %v368
    %v416 = vunpack.c.h.b16 %v368
    %v417 = vunpack.c.l.b16 %v369
    %v418 = vunpack.c.h.b16 %v369
    %v419 = vunpack.c.l.b16 %v370
    %v420 = vunpack.c.h.b16 %v370
    %v421 = vunpack.c.l.b16 %v371
    %v422 = vunpack.c.h.b16 %v371
    %v423 = vunpack.c.l.b16 %v372
    %v424 = vunpack.c.h.b16 %v372
    %v425 = vunpack.c.l.b16 %v373
    %v426 = vunpack.c.h.b16 %v373
    %v427 = vunpack.c.l.b16 %v374
    %v428 = vunpack.c.h.b16 %v374
    %v429 = vunpack.c.l.b16 %v375
    %v430 = vunpack.c.h.b16 %v375
    %v431 = vunpack.c.l.b16 %v376
    %v432 = vunpack.c.h.b16 %v376
    %v433 = vunpack.c.l.b16 %v377
    %v434 = vunpack.c.h.b16 %v377
    %v435 = vunpack.c.l.b16 %v378
    %v436 = vunpack.c.h.b16 %v378
    %v437 = vunpack.c.l.b16 %v379
    %v438 = vunpack.c.h.b16 %v379
    %v439 = vunpack.c.l.b16 %v380
    %v440 = vunpack.c.h.b16 %v380
    %v441 = vpack.c.b16 %v411, %v409
    %v442 = vpack.c.b16 %v412, %v410
    %v443 = vpack.c.b16 %v415, %v413
    %v444 = vpack.c.b16 %v416, %v414
    %v445 = vpack.c.b16 %v419, %v417
    %v446 = vpack.c.b16 %v420, %v418
    %v447 = vpack.c.b16 %v423, %v421
    %v448 = vpack.c.b16 %v424, %v422
    %v449 = vpack.c.b16 %v427, %v425
    %v450 = vpack.c.b16 %v428, %v426
    %v451 = vpack.c.b16 %v431, %v429
    %v452 = vpack.c.b16 %v432, %v430
    %v453 = vpack.c.b16 %v435, %v433
    %v454 = vpack.c.b16 %v436, %v434
    %v455 = vpack.c.b16 %v439, %v437
    %v456 = vpack.c.b16 %v440, %v438
    %473 = vmatprep.subr.bf16.mxu0 %v442
    %474 = vmatpush1.bf16.msra.mxu0 %v441
    %475 = vmatprep.subr.bf16.mxu0 %v444
    %476 = vmatpush1.bf16.msra.mxu0 %v443
    %477 = vmatprep.subr.bf16.mxu0 %v446
    %478 = vmatpush1.bf16.msra.mxu0 %v445
    %479 = vmatprep.subr.bf16.mxu0 %v448
    %480 = vmatpush1.bf16.msra.mxu0 %v447
    %481 = vmatprep.subr.bf16.mxu0 %v450
    %482 = vmatpush1.bf16.msra.mxu0 %v449
    %483 = vmatprep.subr.bf16.mxu0 %v452
    %484 = vmatpush1.bf16.msra.mxu0 %v451
    %485 = vmatprep.subr.bf16.mxu0 %v454
    %486 = vmatpush1.bf16.msra.mxu0 %v453
    %487 = vmatprep.subr.bf16.mxu0 %v456
    %488 = vmatpush1.bf16.msra.mxu0 %v455
    %489 = vmatprep.subr.bf16.mxu0 0
    %490 = vmatpush1.bf16.msra.mxu0 0
    %491 = vmatprep.subr.bf16.mxu0 0
    %492 = vmatpush1.bf16.msra.mxu0 0
    %493 = vmatprep.subr.bf16.mxu0 0
    %494 = vmatpush1.bf16.msra.mxu0 0
    %495 = vmatprep.subr.bf16.mxu0 0
    %496 = vmatpush1.bf16.msra.mxu0 0
    %497 = vmatprep.subr.bf16.mxu0 0
    %498 = vmatpush1.bf16.msra.mxu0 0
    %499 = vmatprep.subr.bf16.mxu0 0
    %500 = vmatpush1.bf16.msra.mxu0 0
    %501 = vmatprep.subr.bf16.mxu0 0
    %502 = vmatpush1.bf16.msra.mxu0 0
    %503 = vmatprep.subr.bf16.mxu0 0
    %504 = vmatpush1.bf16.msra.mxu0 0
    %505 = vmatprep.mubr.bf16.mxu0 0
    %506 = vmatmul.mubr.bf16.gmra.mrb[0].mxu0 %v364
    %v507 = vpop.f32.mrb[0].mxu0
    %v508 = vadd.f32 %v386, %v507
    %v509 = vpop.f32.mrb[0].mxu0
    %v510 = vadd.f32 %v390, %v509
    %v511 = vpop.f32.mrb[0].mxu0
    %v512 = vpop.f32.mrb[0].mxu0
    %513 = vdwg.mxu0
    %514 = vst [vmem:[#allocation2] sm:$0x3] %v508
    %515 = vst [vmem:[#allocation4] sm:$0x3] %v510
    %v516 = vmul.f32 %v510, 0.5
    %v517 = vmul.f32 %v516, 1.442695
    %v518 = vpow.pop %v517
    %v519 = vld [vmem:[%s1] sm:$0x3]
    %v520 = vmul.f32 %v518, %v519
    %v521 = vadd.f32 %v508, %v520
    %v522 = vpack.c.bf16 %v521, %v521
    %v523 = vld [vmem:[%s2] sm:$0xf]
    %v524 = vld [vmem:[%s2 + $0x4] sm:$0xf]
    %v525 = vld [vmem:[%s2 + $0x8] sm:$0xf]
    %v526 = vld [vmem:[%s2 + $0xc] sm:$0xf]
    %v527 = vld [vmem:[%s2 + $0x10] sm:$0xf]
    %v528 = vld [vmem:[%s2 + $0x14] sm:$0xf]
    %v529 = vld [vmem:[%s2 + $0x18] sm:$0xf]
    %v530 = vld [vmem:[%s2 + $0x1c] sm:$0xf]
    %v531 = vld [vmem:[%s2 + $0x20] sm:$0xf]
    %v532 = vld [vmem:[%s2 + $0x24] sm:$0xf]
    %v533 = vld [vmem:[%s2 + $0x28] sm:$0xf]
    %v534 = vld [vmem:[%s2 + $0x2c] sm:$0xf]
    %v535 = vld [vmem:[%s2 + $0x30] sm:$0xf]
    %v536 = vld [vmem:[%s2 + $0x34] sm:$0xf]
    %v537 = vld [vmem:[%s2 + $0x38] sm:$0xf]
    %v538 = vld [vmem:[%s2 + $0x3c] sm:$0xf]
    %v539 = vld [vmem:[%s3] sm:$0x1]
    %v541 = vlaneseq
    %v542 = vshrl.u32 %v541, 7
    %v543 = vsub.s32 0, %v542
    %v544 = vrot.slane %v539, %v543
    %v562 = vunpack.c.l.b16 %v523
    %v563 = vunpack.c.l.b16 %v524
    %v564 = vunpack.c.l.b16 %v525
    %v565 = vunpack.c.l.b16 %v526
    %v566 = vunpack.c.l.b16 %v527
    %v567 = vunpack.c.l.b16 %v528
    %v568 = vunpack.c.l.b16 %v529
    %v569 = vunpack.c.l.b16 %v530
    %v570 = vunpack.c.l.b16 %v531
    %v571 = vunpack.c.l.b16 %v532
    %v572 = vunpack.c.l.b16 %v533
    %v573 = vunpack.c.l.b16 %v534
    %v574 = vunpack.c.l.b16 %v535
    %v575 = vunpack.c.l.b16 %v536
    %v576 = vunpack.c.l.b16 %v537
    %v577 = vunpack.c.l.b16 %v538
    %v578 = vpack.c.b16 %v563, %v562
    %v579 = vpack.c.b16 %v565, %v564
    %v580 = vpack.c.b16 %v567, %v566
    %v581 = vpack.c.b16 %v569, %v568
    %v582 = vpack.c.b16 %v571, %v570
    %v583 = vpack.c.b16 %v573, %v572
    %v584 = vpack.c.b16 %v575, %v574
    %v585 = vpack.c.b16 %v577, %v576
    %594 = vmatprep.subr.bf16.mxu0 0
    %595 = vmatpush1.bf16.msra.mxu0 %v578
    %596 = vmatprep.subr.bf16.mxu0 0
    %597 = vmatpush1.bf16.msra.mxu0 %v579
    %598 = vmatprep.subr.bf16.mxu0 0
    %599 = vmatpush1.bf16.msra.mxu0 %v580
    %600 = vmatprep.subr.bf16.mxu0 0
    %601 = vmatpush1.bf16.msra.mxu0 %v581
    %602 = vmatprep.subr.bf16.mxu0 0
    %603 = vmatpush1.bf16.msra.mxu0 %v582
    %604 = vmatprep.subr.bf16.mxu0 0
    %605 = vmatpush1.bf16.msra.mxu0 %v583
    %606 = vmatprep.subr.bf16.mxu0 0
    %607 = vmatpush1.bf16.msra.mxu0 %v584
    %608 = vmatprep.subr.bf16.mxu0 0
    %609 = vmatpush1.bf16.msra.mxu0 %v585
    %610 = vmatprep.subr.bf16.mxu0 0
    %611 = vmatpush1.bf16.msra.mxu0 0
    %612 = vmatprep.subr.bf16.mxu0 0
    %613 = vmatpush1.bf16.msra.mxu0 0
    %614 = vmatprep.subr.bf16.mxu0 0
    %615 = vmatpush1.bf16.msra.mxu0 0
    %616 = vmatprep.subr.bf16.mxu0 0
    %617 = vmatpush1.bf16.msra.mxu0 0
    %618 = vmatprep.subr.bf16.mxu0 0
    %619 = vmatpush1.bf16.msra.mxu0 0
    %620 = vmatprep.subr.bf16.mxu0 0
    %621 = vmatpush1.bf16.msra.mxu0 0
    %622 = vmatprep.subr.bf16.mxu0 0
    %623 = vmatpush1.bf16.msra.mxu0 0
    %624 = vmatprep.subr.bf16.mxu0 0
    %625 = vmatpush1.bf16.msra.mxu0 0
    %626 = vmatprep.mubr.bf16.mxu0 0
    %627 = vmatmul.mubr.bf16.gmra.mrb[0].mxu0 %v522
    %v628 = vpop.f32.mrb[0].mxu0
    %v629 = vadd.f32 %v544, %v628
    %v630 = vpop.f32.mrb[0].mxu0
    %v631 = vpop.f32.mrb[0].mxu0
    %v632 = vpop.f32.mrb[0].mxu0
    %633 = vdwg.mxu0
    %v634 = vmax.f32 %v629, 0.0
    %v635 = vpack.c.bf16 %v634, %v634
    %v636 = vld [vmem:[%s4] sm:$0xf]
    %v637 = vld [vmem:[%s4 + $0x4] sm:$0xf]
    %v638 = vld [vmem:[%s4 + $0x8] sm:$0xf]
    %v639 = vld [vmem:[%s4 + $0xc] sm:$0xf]
    %v640 = vld [vmem:[%s4 + $0x10] sm:$0xf]
    %v641 = vld [vmem:[%s4 + $0x14] sm:$0xf]
    %v642 = vld [vmem:[%s4 + $0x18] sm:$0xf]
    %v643 = vld [vmem:[%s4 + $0x1c] sm:$0xf]
    %v644 = vld [vmem:[%s5] sm:$0x1]
    %v646 = vlaneseq
    %v647 = vshrl.u32 %v646, 7
    %v648 = vsub.s32 0, %v647
    %v649 = vrot.slane %v644, %v648
    %v659 = vunpack.c.l.b16 %v636
    %v660 = vunpack.c.l.b16 %v637
    %v661 = vunpack.c.l.b16 %v638
    %v662 = vunpack.c.l.b16 %v639
    %v663 = vunpack.c.l.b16 %v640
    %v664 = vunpack.c.l.b16 %v641
    %v665 = vunpack.c.l.b16 %v642
    %v666 = vunpack.c.l.b16 %v643
    %v667 = vpack.c.b16 %v660, %v659
    %v668 = vpack.c.b16 %v662, %v661
    %v669 = vpack.c.b16 %v664, %v663
    %v670 = vpack.c.b16 %v666, %v665
    %v676 = vsel %vm207, %v635, 0
    %678 = vmatprep.subr.bf16.mxu0 0
    %679 = vmatpush1.bf16.msra.mxu0 %v667
    %680 = vmatprep.subr.bf16.mxu0 0
    %681 = vmatpush1.bf16.msra.mxu0 %v668
    %682 = vmatprep.subr.bf16.mxu0 0
    %683 = vmatpush1.bf16.msra.mxu0 %v669
    %684 = vmatprep.subr.bf16.mxu0 0
    %685 = vmatpush1.bf16.msra.mxu0 %v670
    %686 = vmatprep.subr.bf16.mxu0 0
    %687 = vmatpush1.bf16.msra.mxu0 0
    %688 = vmatprep.subr.bf16.mxu0 0
    %689 = vmatpush1.bf16.msra.mxu0 0
    %690 = vmatprep.subr.bf16.mxu0 0
    %691 = vmatpush1.bf16.msra.mxu0 0
    %692 = vmatprep.subr.bf16.mxu0 0
    %693 = vmatpush1.bf16.msra.mxu0 0
    %694 = vmatprep.subr.bf16.mxu0 0
    %695 = vmatpush1.bf16.msra.mxu0 0
    %696 = vmatprep.subr.bf16.mxu0 0
    %697 = vmatpush1.bf16.msra.mxu0 0
    %698 = vmatprep.subr.bf16.mxu0 0
    %699 = vmatpush1.bf16.msra.mxu0 0
    %700 = vmatprep.subr.bf16.mxu0 0
    %701 = vmatpush1.bf16.msra.mxu0 0
    %702 = vmatprep.subr.bf16.mxu0 0
    %703 = vmatpush1.bf16.msra.mxu0 0
    %704 = vmatprep.subr.bf16.mxu0 0
    %705 = vmatpush1.bf16.msra.mxu0 0
    %706 = vmatprep.subr.bf16.mxu0 0
    %707 = vmatpush1.bf16.msra.mxu0 0
    %708 = vmatprep.subr.bf16.mxu0 0
    %709 = vmatpush1.bf16.msra.mxu0 0
    %710 = vmatprep.mubr.bf16.mxu0 0
    %711 = vmatmul.mubr.bf16.gmra.mrb[0].mxu0 %v676
    %v712 = vpop.f32.mrb[0].mxu0
    %v713 = vadd.f32 %v649, %v712
    %v714 = vpop.f32.mrb[0].mxu0
    %v715 = vpop.f32.mrb[0].mxu0
    %v716 = vpop.f32.mrb[0].mxu0
    %717 = vdwg.mxu0
    %v718 = vpack.c.bf16 %v713, %v713
    %v719 = vld [vmem:[%s10] sm:$0xf]
    %v720 = vld [vmem:[%s10 + $0x4] sm:$0xf]
    %v721 = vld [vmem:[%s10 + $0x8] sm:$0xf]
    %v722 = vld [vmem:[%s10 + $0xc] sm:$0xf]
    %v723 = vld [vmem:[%s10 + $0x10] sm:$0xf]
    %v724 = vld [vmem:[%s10 + $0x14] sm:$0xf]
    %v725 = vld [vmem:[%s10 + $0x18] sm:$0xf]
    %v726 = vld [vmem:[%s10 + $0x1c] sm:$0xf]
    %v727 = vld [vmem:[%s10 + $0x20] sm:$0xf]
    %v728 = vld [vmem:[%s10 + $0x24] sm:$0xf]
    %v729 = vld [vmem:[%s10 + $0x28] sm:$0xf]
    %v730 = vld [vmem:[%s10 + $0x2c] sm:$0xf]
    %v731 = vld [vmem:[%s10 + $0x30] sm:$0xf]
    %v732 = vld [vmem:[%s10 + $0x34] sm:$0xf]
    %v733 = vld [vmem:[%s10 + $0x38] sm:$0xf]
    %v734 = vld [vmem:[%s10 + $0x3c] sm:$0xf]
    %v735 = vld [vmem:[%s11] sm:$0x1]
    %v737 = vlaneseq
    %v738 = vshrl.u32 %v737, 7
    %v739 = vsub.s32 0, %v738
    %v740 = vrot.slane %v735, %v739
    %v758 = vunpack.c.l.b16 %v719
    %v759 = vunpack.c.l.b16 %v720
    %v760 = vunpack.c.l.b16 %v721
    %v761 = vunpack.c.l.b16 %v722
    %v762 = vunpack.c.l.b16 %v723
    %v763 = vunpack.c.l.b16 %v724
    %v764 = vunpack.c.l.b16 %v725
    %v765 = vunpack.c.l.b16 %v726
    %v766 = vunpack.c.l.b16 %v727
    %v767 = vunpack.c.l.b16 %v728
    %v768 = vunpack.c.l.b16 %v729
    %v769 = vunpack.c.l.b16 %v730
    %v770 = vunpack.c.l.b16 %v731
    %v771 = vunpack.c.l.b16 %v732
    %v772 = vunpack.c.l.b16 %v733
    %v773 = vunpack.c.l.b16 %v734
    %v774 = vpack.c.b16 %v759, %v758
    %v775 = vpack.c.b16 %v761, %v760
    %v776 = vpack.c.b16 %v763, %v762
    %v777 = vpack.c.b16 %v765, %v764
    %v778 = vpack.c.b16 %v767, %v766
    %v779 = vpack.c.b16 %v769, %v768
    %v780 = vpack.c.b16 %v771, %v770
    %v781 = vpack.c.b16 %v773, %v772
    %790 = vmatprep.subr.bf16.mxu0 0
    %791 = vmatpush1.bf16.msra.mxu0 %v774
    %792 = vmatprep.subr.bf16.mxu0 0
    %793 = vmatpush1.bf16.msra.mxu0 %v775
    %794 = vmatprep.subr.bf16.mxu0 0
    %795 = vmatpush1.bf16.msra.mxu0 %v776
    %796 = vmatprep.subr.bf16.mxu0 0
    %797 = vmatpush1.bf16.msra.mxu0 %v777
    %798 = vmatprep.subr.bf16.mxu0 0
    %799 = vmatpush1.bf16.msra.mxu0 %v778
    %800 = vmatprep.subr.bf16.mxu0 0
    %801 = vmatpush1.bf16.msra.mxu0 %v779
    %802 = vmatprep.subr.bf16.mxu0 0
    %803 = vmatpush1.bf16.msra.mxu0 %v780
    %804 = vmatprep.subr.bf16.mxu0 0
    %805 = vmatpush1.bf16.msra.mxu0 %v781
    %806 = vmatprep.subr.bf16.mxu0 0
    %807 = vmatpush1.bf16.msra.mxu0 0
    %808 = vmatprep.subr.bf16.mxu0 0
    %809 = vmatpush1.bf16.msra.mxu0 0
    %810 = vmatprep.subr.bf16.mxu0 0
    %811 = vmatpush1.bf16.msra.mxu0 0
    %812 = vmatprep.subr.bf16.mxu0 0
    %813 = vmatpush1.bf16.msra.mxu0 0
    %814 = vmatprep.subr.bf16.mxu0 0
    %815 = vmatpush1.bf16.msra.mxu0 0
    %816 = vmatprep.subr.bf16.mxu0 0
    %817 = vmatpush1.bf16.msra.mxu0 0
    %818 = vmatprep.subr.bf16.mxu0 0
    %819 = vmatpush1.bf16.msra.mxu0 0
    %820 = vmatprep.subr.bf16.mxu0 0
    %821 = vmatpush1.bf16.msra.mxu0 0
    %822 = vmatprep.mubr.bf16.mxu0 0
    %823 = vmatmul.mubr.bf16.gmra.mrb[0].mxu0 %v718
    %v824 = vpop.f32.mrb[0].mxu0
    %v825 = vadd.f32 %v740, %v824
    %v826 = vpop.f32.mrb[0].mxu0
    %v827 = vpop.f32.mrb[0].mxu0
    %v828 = vpop.f32.mrb[0].mxu0
    %829 = vdwg.mxu0
    %v830 = vmax.f32 %v825, 0.0
    %v831 = vpack.c.bf16 %v830, %v830
    %v832 = vld [vmem:[%s12] sm:$0xf]
    %v833 = vld [vmem:[%s12 + $0x4] sm:$0xf]
    %v834 = vld [vmem:[%s12 + $0x8] sm:$0xf]
    %v835 = vld [vmem:[%s12 + $0xc] sm:$0xf]
    %v836 = vld [vmem:[%s12 + $0x10] sm:$0xf]
    %v837 = vld [vmem:[%s12 + $0x14] sm:$0xf]
    %v838 = vld [vmem:[%s12 + $0x18] sm:$0xf]
    %v839 = vld [vmem:[%s12 + $0x1c] sm:$0xf]
    %v840 = vld [vmem:[%s13] sm:$0x1]
    %v842 = vlaneseq
    %v843 = vshrl.u32 %v842, 7
    %v844 = vsub.s32 0, %v843
    %v845 = vrot.slane %v840, %v844
    %v855 = vunpack.c.l.b16 %v832
    %v856 = vunpack.c.l.b16 %v833
    %v857 = vunpack.c.l.b16 %v834
    %v858 = vunpack.c.l.b16 %v835
    %v859 = vunpack.c.l.b16 %v836
    %v860 = vunpack.c.l.b16 %v837
    %v861 = vunpack.c.l.b16 %v838
    %v862 = vunpack.c.l.b16 %v839
    %v863 = vpack.c.b16 %v856, %v855
    %v864 = vpack.c.b16 %v858, %v857
    %v865 = vpack.c.b16 %v860, %v859
    %v866 = vpack.c.b16 %v862, %v861
    %v872 = vsel %vm207, %v831, 0
    %874 = vmatprep.subr.bf16.mxu0 0
    %875 = vmatpush1.bf16.msra.mxu0 %v863
    %876 = vmatprep.subr.bf16.mxu0 0
    %877 = vmatpush1.bf16.msra.mxu0 %v864
    %878 = vmatprep.subr.bf16.mxu0 0
    %879 = vmatpush1.bf16.msra.mxu0 %v865
    %880 = vmatprep.subr.bf16.mxu0 0
    %881 = vmatpush1.bf16.msra.mxu0 %v866
    %882 = vmatprep.subr.bf16.mxu0 0
    %883 = vmatpush1.bf16.msra.mxu0 0
    %884 = vmatprep.subr.bf16.mxu0 0
    %885 = vmatpush1.bf16.msra.mxu0 0
    %886 = vmatprep.subr.bf16.mxu0 0
    %887 = vmatpush1.bf16.msra.mxu0 0
    %888 = vmatprep.subr.bf16.mxu0 0
    %889 = vmatpush1.bf16.msra.mxu0 0
    %890 = vmatprep.subr.bf16.mxu0 0
    %891 = vmatpush1.bf16.msra.mxu0 0
    %892 = vmatprep.subr.bf16.mxu0 0
    %893 = vmatpush1.bf16.msra.mxu0 0
    %894 = vmatprep.subr.bf16.mxu0 0
    %895 = vmatpush1.bf16.msra.mxu0 0
    %896 = vmatprep.subr.bf16.mxu0 0
    %897 = vmatpush1.bf16.msra.mxu0 0
    %898 = vmatprep.subr.bf16.mxu0 0
    %899 = vmatpush1.bf16.msra.mxu0 0
    %900 = vmatprep.subr.bf16.mxu0 0
    %901 = vmatpush1.bf16.msra.mxu0 0
    %902 = vmatprep.subr.bf16.mxu0 0
    %903 = vmatpush1.bf16.msra.mxu0 0
    %904 = vmatprep.subr.bf16.mxu0 0
    %905 = vmatpush1.bf16.msra.mxu0 0
    %906 = vmatprep.mubr.bf16.mxu0 0
    %907 = vmatmul.mubr.bf16.gmra.mrb[0].mxu0 %v872
    %v908 = vpop.f32.mrb[0].mxu0
    %v909 = vadd.f32 %v845, %v908
    %v910 = vpop.f32.mrb[0].mxu0
    %v911 = vpop.f32.mrb[0].mxu0
    %v912 = vpop.f32.mrb[0].mxu0
    %913 = vdwg.mxu0
    %914 = vst [vmem:[%s14] sm:$0x3] %v909
    // Predicated region
    $region58: #{b_encodeco_forward.7} parent=1 // pred_check
      _
    $region59: #{b_encodeco_forward.7} parent=1 // pred_check_branch
      %916 = sbr.rel (0) target = $region61
    $region60: #{b_encodeco_forward.7} parent=1 // pred_region
      _
    $region61: #{b_encodeco_forward.7} parent=1 // pred_fallthru
      _
    // Predicated region
    $region62: #{b_encodeco_forward.7} parent=1 // pred_check
      _
    $region63: #{b_encodeco_forward.7} parent=1 // pred_check_branch
      %918 = sbr.rel (0) target = $region65
    $region64: #{b_encodeco_forward.7} parent=1 // pred_region
      %s920 = ssub.s32 32, 32
      %921 = vsyncadd [#allocation3], %s920
      %s923 = sshll.u32 [#allocation2], 4
      %s924 = int_to_ptr.vmem [resolvable:$true] %s923
      %926 = dma.vmem_to_hbm [thread:$0]  %s924, 32, %s15, [#allocation3]
    $region65: #{b_encodeco_forward.7} parent=1 // pred_fallthru
      _
    // Predicated region
    $region66: #{b_encodeco_forward.7} parent=1 // pred_check
      _
    $region67: #{b_encodeco_forward.7} parent=1 // pred_check_branch
      %928 = sbr.rel (0) target = $region69
    $region68: #{b_encodeco_forward.7} parent=1 // pred_region
      %s930 = ssub.s32 32, 32
      %931 = vsyncadd [#allocation5], %s930
      %s933 = sshll.u32 [#allocation4], 4
      %s934 = int_to_ptr.vmem [resolvable:$true] %s933
      %936 = dma.vmem_to_hbm [thread:$0]  %s934, 32, %s16, [#allocation5]
    $region69: #{b_encodeco_forward.7} parent=1 // pred_fallthru
      _
    // Predicated region
    $region70: #{b_encodeco_forward.7} parent=1 // pred_check
      _
    $region71: #{b_encodeco_forward.7} parent=1 // pred_check_branch
      %938 = sbr.rel (0) target = $region73
    $region72: #{b_encodeco_forward.7} parent=1 // pred_region
      _
    $region73: #{b_encodeco_forward.7} parent=1 // pred_fallthru
      _
    // Predicated region
    $region74: #{b_encodeco_forward.7} parent=1 // pred_check
      _
    $region75: #{b_encodeco_forward.7} parent=1 // pred_check_branch
      %940 = sbr.rel (0) target = $region77
    $region76: #{b_encodeco_forward.7} parent=1 // pred_region
      %941 = dma.done [#allocation3], 32
    $region77: #{b_encodeco_forward.7} parent=1 // pred_fallthru
      _
    // Predicated region
    $region78: #{b_encodeco_forward.7} parent=1 // pred_check
      _
    $region79: #{b_encodeco_forward.7} parent=1 // pred_check_branch
      %943 = sbr.rel (0) target = $region81
    $region80: #{b_encodeco_forward.7} parent=1 // pred_region
      %944 = dma.done [#allocation5], 32
    $region81: #{b_encodeco_forward.7} parent=1 // pred_fallthru
      _
    %945 = vsyncpa [#allocation3], 1
    %946 = vsyncpa [#allocation5], 1

// kernel: b_encodeco_forward.8
$region0: #{b_encodeco_forward.8}
  #allocation0 [shape = 'u32[]', space=smem, size = 0x4, offset = 0x4, fixed_abs, tag = 'smem constant byte address 0x4 - core index']
  #allocation1 [shape = 'u32[144,128]{1,0:T(1,128)}', space=vmem, size = 0x12000, scoped, tag = 'internal scratch']
  %s0 = inlined_call_operand.vmem [shape: bf16[16,32], index: 0, kind: input, shape index: {}]
  %s1 = inlined_call_operand.vmem [shape: f32[32,32], index: 1, kind: input, shape index: {}]
  %s2 = inlined_call_operand.vmem [shape: f32[16,1], index: 2, kind: input, shape index: {}]
  %s3 = inlined_call_operand.vmem [shape: f32[16,32], index: 3, kind: output, shape index: {}]
  %s4 = sld [smem:[#allocation0]]
  $region22: #{b_encodeco_forward.8} parent=0
    _
  %s6 = ssub.s32 1, %s4
  %s7 = scalar_select 0, %s6, %s4
  // Predicated region
  $region2: #{b_encodeco_forward.8} parent=0 // pred_check
    _
  $region3: #{b_encodeco_forward.8} parent=0 // pred_check_branch
    %9 = sbr.rel (0) target = $region5
  $region4: #{b_encodeco_forward.8} parent=0 // pred_region
    _
  $region5: #{b_encodeco_forward.8} parent=0 // pred_fallthru
    _
  // Predicated region
  $region6: #{b_encodeco_forward.8} parent=0 // pred_check
    _
  $region7: #{b_encodeco_forward.8} parent=0 // pred_check_branch
    %11 = sbr.rel (0) target = $region9
  $region8: #{b_encodeco_forward.8} parent=0 // pred_region
    _
  $region9: #{b_encodeco_forward.8} parent=0 // pred_fallthru
    _
  // Predicated region
  $region10: #{b_encodeco_forward.8} parent=0 // pred_check
    _
  $region11: #{b_encodeco_forward.8} parent=0 // pred_check_branch
    %13 = sbr.rel (0) target = $region13
  $region12: #{b_encodeco_forward.8} parent=0 // pred_region
    _
  $region13: #{b_encodeco_forward.8} parent=0 // pred_fallthru
    _
  %v15 = vld [vmem:[%s0] sm:$0xf]
  %v16 = vld [vmem:[%s0 + $0x4] sm:$0xf]
  %v17 = vld [vmem:[%s1] sm:$0xff]
  %v18 = vld [vmem:[%s1 + $0x8] sm:$0xff]
  %v19 = vld [vmem:[%s1 + $0x10] sm:$0xff]
  %v20 = vld [vmem:[%s1 + $0x18] sm:$0xff]
  %v21 = vpack.c.bf16 %v18, %v17
  %v22 = vpack.c.bf16 %v20, %v19
  %v23 = vld [vmem:[%s2] sm:$0xff]
  %v24 = vld [vmem:[%s2 + $0x8] sm:$0xff]
  %26 = vset.pattern.permute.xlu0 0
  %27 = vperm.xlu0 %26, %v23
  %v28 = vpop.permute.xlu0 %27
  %31 = vset.pattern.permute.xlu0 0
  %32 = vperm.xlu0 %31, %v24
  %v33 = vpop.permute.xlu0 %32
  %v37 = vunpack.c.l.b16 %v15
  %v38 = vunpack.c.l.b16 %v16
  %v39 = vpack.c.b16 %v38, %v37
  %vm40 = vcmask 261120
  %v42 = vsel %vm40, %v39, 0
  %44 = vmatprep.subr.bf16.mxu0 0
  %45 = vmatpush1.bf16.msra.mxu0 %v21
  %46 = vmatprep.subr.bf16.mxu0 0
  %47 = vmatpush1.bf16.msra.mxu0 %v22
  %48 = vmatprep.subr.bf16.mxu0 0
  %49 = vmatpush1.bf16.msra.mxu0 0
  %50 = vmatprep.subr.bf16.mxu0 0
  %51 = vmatpush1.bf16.msra.mxu0 0
  %52 = vmatprep.subr.bf16.mxu0 0
  %53 = vmatpush1.bf16.msra.mxu0 0
  %54 = vmatprep.subr.bf16.mxu0 0
  %55 = vmatpush1.bf16.msra.mxu0 0
  %56 = vmatprep.subr.bf16.mxu0 0
  %57 = vmatpush1.bf16.msra.mxu0 0
  %58 = vmatprep.subr.bf16.mxu0 0
  %59 = vmatpush1.bf16.msra.mxu0 0
  %60 = vmatprep.subr.bf16.mxu0 0
  %61 = vmatpush1.bf16.msra.mxu0 0
  %62 = vmatprep.subr.bf16.mxu0 0
  %63 = vmatpush1.bf16.msra.mxu0 0
  %64 = vmatprep.subr.bf16.mxu0 0
  %65 = vmatpush1.bf16.msra.mxu0 0
  %66 = vmatprep.subr.bf16.mxu0 0
  %67 = vmatpush1.bf16.msra.mxu0 0
  %68 = vmatprep.subr.bf16.mxu0 0
  %69 = vmatpush1.bf16.msra.mxu0 0
  %70 = vmatprep.subr.bf16.mxu0 0
  %71 = vmatpush1.bf16.msra.mxu0 0
  %72 = vmatprep.subr.bf16.mxu0 0
  %73 = vmatpush1.bf16.msra.mxu0 0
  %74 = vmatprep.subr.bf16.mxu0 0
  %75 = vmatpush1.bf16.msra.mxu0 0
  %76 = vmatprep.mubr.bf16.mxu0 0
  %77 = vmatmul.mubr.bf16.gmra.mrb[0].mxu0 %v42
  %v78 = vpop.f32.mrb[0].mxu0
  %v79 = vadd.f32 %v28, %v78
  %v80 = vpop.f32.mrb[0].mxu0
  %v81 = vpop.f32.mrb[0].mxu0
  %v82 = vadd.f32 %v33, %v81
  %v83 = vpop.f32.mrb[0].mxu0
  %84 = vdwg.mxu0
  %v85 = vmax.f32 %v79, 0.0
  %v86 = vmax.f32 %v82, 0.0
  %87 = vst.msk [vmem:[%s3] sm:$0xff] %vm40, %v85
  %88 = vst.msk [vmem:[%s3 + $0x8] sm:$0xff] %vm40, %v86
  // Predicated region
  $region14: #{b_encodeco_forward.8} parent=0 // pred_check
    _
  $region15: #{b_encodeco_forward.8} parent=0 // pred_check_branch
    %90 = sbr.rel (0) target = $region17
  $region16: #{b_encodeco_forward.8} parent=0 // pred_region
    _
  $region17: #{b_encodeco_forward.8} parent=0 // pred_fallthru
    _
  // Predicated region
  $region18: #{b_encodeco_forward.8} parent=0 // pred_check
    _
  $region19: #{b_encodeco_forward.8} parent=0 // pred_check_branch
    %92 = sbr.rel (0) target = $region21
  $region20: #{b_encodeco_forward.8} parent=0 // pred_region
    _
  $region21: #{b_encodeco_forward.8} parent=0 // pred_fallthru
    _

// kernel: b_encodeco_forward.9
$region0: #{b_encodeco_forward.9}
  #allocation0 [shape = 'u32[]', space=smem, size = 0x4, offset = 0x4, fixed_abs, tag = 'smem constant byte address 0x4 - core index']
  #allocation1 [shape = 'u32[144,128]{1,0:T(1,128)}', space=vmem, size = 0x12000, scoped, tag = 'internal scratch']
  %s0 = inlined_call_operand.vmem [shape: bf16[12,16], index: 0, kind: input, shape index: {}]
  %s1 = inlined_call_operand.vmem [shape: f32[16,128], index: 1, kind: input, shape index: {}]
  %s2 = inlined_call_operand.vmem [shape: f32[12,1], index: 2, kind: input, shape index: {}]
  %s3 = inlined_call_operand.vmem [shape: f32[12,128], index: 3, kind: output, shape index: {}]
  %s4 = sld [smem:[#allocation0]]
  $region22: #{b_encodeco_forward.9} parent=0
    _
  %s6 = ssub.s32 1, %s4
  %s7 = scalar_select 0, %s6, %s4
  // Predicated region
  $region2: #{b_encodeco_forward.9} parent=0 // pred_check
    _
  $region3: #{b_encodeco_forward.9} parent=0 // pred_check_branch
    %9 = sbr.rel (0) target = $region5
  $region4: #{b_encodeco_forward.9} parent=0 // pred_region
    _
  $region5: #{b_encodeco_forward.9} parent=0 // pred_fallthru
    _
  // Predicated region
  $region6: #{b_encodeco_forward.9} parent=0 // pred_check
    _
  $region7: #{b_encodeco_forward.9} parent=0 // pred_check_branch
    %11 = sbr.rel (0) target = $region9
  $region8: #{b_encodeco_forward.9} parent=0 // pred_region
    _
  $region9: #{b_encodeco_forward.9} parent=0 // pred_fallthru
    _
  // Predicated region
  $region10: #{b_encodeco_forward.9} parent=0 // pred_check
    _
  $region11: #{b_encodeco_forward.9} parent=0 // pred_check_branch
    %13 = sbr.rel (0) target = $region13
  $region12: #{b_encodeco_forward.9} parent=0 // pred_region
    _
  $region13: #{b_encodeco_forward.9} parent=0 // pred_fallthru
    _
  %v15 = vld [vmem:[%s0] sm:$0xf]
  %v16 = vld [vmem:[%s0 + $0x4] sm:$0x3]
  %v17 = vld [vmem:[%s1] sm:$0xff]
  %v18 = vld [vmem:[%s1 + $0x8] sm:$0xff]
  %v19 = vpack.c.bf16 %v18, %v17
  %v20 = vld [vmem:[%s2] sm:$0xff]
  %v21 = vld [vmem:[%s2 + $0x8] sm:$0xf]
  %23 = vset.pattern.permute.xlu0 0
  %24 = vperm.xlu0 %23, %v20
  %v25 = vpop.permute.xlu0 %24
  %28 = vset.pattern.permute.xlu0 0
  %29 = vperm.xlu0 %28, %v21
  %v30 = vpop.permute.xlu0 %29
  %v34 = vunpack.c.l.b16 %v15
  %v35 = vunpack.c.l.b16 %v16
  %v36 = vpack.c.b16 %v35, %v34
  %vm37 = vcmask 130048
  %v39 = vsel %vm37, %v36, 0
  %41 = vmatprep.subr.bf16.mxu0 0
  %42 = vmatpush1.bf16.msra.mxu0 %v19
  %43 = vmatprep.subr.bf16.mxu0 0
  %44 = vmatpush1.bf16.msra.mxu0 0
  %45 = vmatprep.subr.bf16.mxu0 0
  %46 = vmatpush1.bf16.msra.mxu0 0
  %47 = vmatprep.subr.bf16.mxu0 0
  %48 = vmatpush1.bf16.msra.mxu0 0
  %49 = vmatprep.subr.bf16.mxu0 0
  %50 = vmatpush1.bf16.msra.mxu0 0
  %51 = vmatprep.subr.bf16.mxu0 0
  %52 = vmatpush1.bf16.msra.mxu0 0
  %53 = vmatprep.subr.bf16.mxu0 0
  %54 = vmatpush1.bf16.msra.mxu0 0
  %55 = vmatprep.subr.bf16.mxu0 0
  %56 = vmatpush1.bf16.msra.mxu0 0
  %57 = vmatprep.subr.bf16.mxu0 0
  %58 = vmatpush1.bf16.msra.mxu0 0
  %59 = vmatprep.subr.bf16.mxu0 0
  %60 = vmatpush1.bf16.msra.mxu0 0
  %61 = vmatprep.subr.bf16.mxu0 0
  %62 = vmatpush1.bf16.msra.mxu0 0
  %63 = vmatprep.subr.bf16.mxu0 0
  %64 = vmatpush1.bf16.msra.mxu0 0
  %65 = vmatprep.subr.bf16.mxu0 0
  %66 = vmatpush1.bf16.msra.mxu0 0
  %67 = vmatprep.subr.bf16.mxu0 0
  %68 = vmatpush1.bf16.msra.mxu0 0
  %69 = vmatprep.subr.bf16.mxu0 0
  %70 = vmatpush1.bf16.msra.mxu0 0
  %71 = vmatprep.subr.bf16.mxu0 0
  %72 = vmatpush1.bf16.msra.mxu0 0
  %73 = vmatprep.mubr.bf16.mxu0 0
  %74 = vmatmul.mubr.bf16.gmra.mrb[0].mxu0 %v39
  %v75 = vpop.f32.mrb[0].mxu0
  %v76 = vadd.f32 %v25, %v75
  %v77 = vpop.f32.mrb[0].mxu0
  %v78 = vpop.f32.mrb[0].mxu0
  %v79 = vadd.f32 %v30, %v78
  %v80 = vpop.f32.mrb[0].mxu0
  %81 = vdwg.mxu0
  %v82 = vxor.u32 %v76, 2147483648
  %v83 = vxor.u32 %v79, 2147483648
  %v84 = vmul.f32 %v82, 1.442695
  %v85 = vpow.pop %v84
  %v86 = vmul.f32 %v83, 1.442695
  %v87 = vpow.pop %v86
  %v88 = vadd.f32 %v85, 1.0
  %v89 = vadd.f32 %v87, 1.0
  %v90 = vrcp.pop %v88
  %v91 = vmul.f32 1.0, %v90
  %v92 = vrcp.pop %v89
  %v93 = vmul.f32 1.0, %v92
  %94 = vst [vmem:[%s3] sm:$0xff] %v91
  %95 = vst [vmem:[%s3 + $0x8] sm:$0xf] %v93
  // Predicated region
  $region14: #{b_encodeco_forward.9} parent=0 // pred_check
    _
  $region15: #{b_encodeco_forward.9} parent=0 // pred_check_branch
    %97 = sbr.rel (0) target = $region17
  $region16: #{b_encodeco_forward.9} parent=0 // pred_region
    _
  $region17: #{b_encodeco_forward.9} parent=0 // pred_fallthru
    _
  // Predicated region
  $region18: #{b_encodeco_forward.9} parent=0 // pred_check
    _
  $region19: #{b_encodeco_forward.9} parent=0 // pred_check_branch
    %99 = sbr.rel (0) target = $region21
  $region20: #{b_encodeco_forward.9} parent=0 // pred_region
    _
  $region21: #{b_encodeco_forward.9} parent=0 // pred_fallthru
    _

</llo_original>
